<compile_context>
chip_gen: v6e
topology: v6e:2x2x1
jax: 0.10.0
libtpu: 0.0.40
codegen_flags: <defaults>
</compile_context>

<pallas_src>
import functools
import math

import jax
import jax.numpy as jnp
from jax.experimental import pallas as pl
from jax.experimental.pallas import tpu as pltpu

_MIB = 1 << 20


def _pathway_attention_kernel(
    # inputs
    x_q_ref,     # (1, TQ, D) f32   query tile (residual input)
    x_full_ref,  # (1, S,  D) bf16  full sequence (QKV projection operand)
    wqkv_hbm,    # (D, 3D)    bf16  [wq*scale | wk | wv]   (memory_space=ANY)
    bqkv_ref,    # (1, 3D)    f32   [bq*scale | bk | bv]
    wo_hbm,      # (D, D)     bf16  output projection       (memory_space=ANY)
    bo_ref,      # (1, D)     f32
    ln_g_ref,    # (1, D)     f32
    ln_b_ref,    # (1, D)     f32
    g1w_hbm,     # (D, D//2)  bf16  gate linear 1           (memory_space=ANY)
    g1b_ref,     # (1, D//2)  f32
    g2w_ref,     # (1, D//2)  f32
    g2b_ref,     # (1, 1)     f32
    # outputs
    out_ref,     # (1, TQ, D) f32
    attn_ref,    # (1, TQ, S) bf16
    # scratch (persists across the query-tile grid axis)
    q_s,         # (S, D) bf16
    kT_s,        # (D, S) bf16   K transposed (lane-dense S)
    v_s,         # (S, D) bf16
    wqkv_vm,     # (D, 3D) bf16  single-buffered weights
    wo_vm,       # (D, D)  bf16
    g1w_vm,      # (D, D//2) bf16
    w_sem,       # DMA sems (3,)
    *,
    num_heads: int,
):
    H = num_heads
    TQ = x_q_ref.shape[1]
    D = x_q_ref.shape[2]
    S = x_full_ref.shape[1]
    hd = D // H
    qt = pl.program_id(1)

    # ---- once per batch element: load weights (single-buffered) + fused QKV projection ----
    @pl.when(qt == 0)
    def _load_weights_and_project():
        cw = pltpu.make_async_copy(wqkv_hbm, wqkv_vm, w_sem.at[0])
        co = pltpu.make_async_copy(wo_hbm, wo_vm, w_sem.at[1])
        cg = pltpu.make_async_copy(g1w_hbm, g1w_vm, w_sem.at[2])
        cw.start(); co.start(); cg.start()
        cw.wait(); co.wait(); cg.wait()

        # one (S, D) x (D, 3D) MXU matmul; 1/sqrt(hd) already folded into wq / bq.
        xb = x_full_ref[0]                                              # (S, D) bf16
        qkv = jnp.dot(xb, wqkv_vm[...], preferred_element_type=jnp.float32)
        qkv = qkv + bqkv_ref[...]                                       # (S, 3D) f32
        # contiguous lane-dense stores (no per-head scatter); K transposed once.
        q_s[...] = qkv[:, :D].astype(jnp.bfloat16)
        kT_s[...] = qkv[:, D:2 * D].T.astype(jnp.bfloat16)              # (D, S)
        v_s[...] = qkv[:, 2 * D:].astype(jnp.bfloat16)

    # ---- attention for this query tile; heads sliced only at the matmul boundary ----
    q_start = pl.multiple_of(qt * TQ, TQ)

    p_sum = jnp.zeros((TQ, S), jnp.float32)
    o_parts = []
    for h in range(H):
        q_h = q_s[pl.ds(q_start, TQ), pl.ds(h * hd, hd)]                # (TQ, hd) bf16
        k_h = kT_s[pl.ds(h * hd, hd), :]                                # (hd, S)  bf16
        s_h = jnp.dot(q_h, k_h, preferred_element_type=jnp.float32)     # (TQ, S)  f32
        s_h = s_h - jnp.max(s_h, axis=-1, keepdims=True)
        p_h = jnp.exp(s_h)
        p_h = p_h * pl.reciprocal(jnp.sum(p_h, axis=-1, keepdims=True), approx=True)
        p_sum = p_sum + p_h
        v_h = v_s[:, pl.ds(h * hd, hd)]                                 # (S, hd)  bf16
        o_parts.append(jnp.dot(p_h.astype(jnp.bfloat16), v_h,
                               preferred_element_type=jnp.float32))     # (TQ, hd) f32

    # heads-averaged attention weights (nn.MultiheadAttention default), bf16 writeback
    attn_ref[0] = (p_sum * (1.0 / H)).astype(attn_ref.dtype)

    # ---- single (TQ, D) x (D, D) output projection ----
    o_cat = jnp.concatenate(o_parts, axis=-1).astype(jnp.bfloat16)      # (TQ, D)
    attn_out = jnp.dot(o_cat, wo_vm[...], preferred_element_type=jnp.float32)
    attn_out = attn_out + bo_ref[...]

    # ---- residual + LayerNorm (eps = 1e-5, nn.LayerNorm default) ----
    y = attn_out + x_q_ref[0]
    mean = jnp.mean(y, axis=-1, keepdims=True)
    var = jnp.mean((y - mean) * (y - mean), axis=-1, keepdims=True)
    yn = (y - mean) * jax.lax.rsqrt(var + 1e-5)
    yn = yn * ln_g_ref[...] + ln_b_ref[...]

    # ---- pathway gate: Linear(D, D//2) -> ReLU -> Linear(D//2, 1) -> Sigmoid ----
    h1 = jnp.dot(yn.astype(jnp.bfloat16), g1w_vm[...],
                 preferred_element_type=jnp.float32) + g1b_ref[...]
    h1 = jnp.maximum(h1, 0.0)
    gate = jnp.sum(h1 * g2w_ref[...], axis=-1, keepdims=True) + g2b_ref[...]
    gate = jax.nn.sigmoid(gate)

    out_ref[0] = yn * gate


def _round_up(x, m):
    return (x + m - 1) // m * m


def _padded_bytes(shape, dtype):
    """VMEM footprint of a buffer, accounting for (sublane, lane) tile padding."""
    itemsize = jnp.dtype(dtype).itemsize
    sublane_pack = {4: 8, 2: 16, 1: 32}[itemsize]
    shape = (1, 1) + tuple(shape)
    lead = 1
    for d in shape[:-2]:
        lead *= d
    return lead * _round_up(shape[-2], sublane_pack) * _round_up(shape[-1], 128) * itemsize


def _vmem_limit_bytes(S, D, q_tile):
    bf, f32 = jnp.bfloat16, jnp.float32
    d2 = D // 2
    pipelined = (
        _padded_bytes((q_tile, D), f32)        # x_q tile
        + _padded_bytes((S, D), bf)            # x_full (bf16)
        + _padded_bytes((1, 3 * D), f32)
        + 3 * _padded_bytes((1, D), f32)
        + 2 * _padded_bytes((1, d2), f32)
        + _padded_bytes((1, 1), f32)
        + _padded_bytes((q_tile, D), f32)      # out tile
        + _padded_bytes((q_tile, S), bf)       # attn tile (bf16)
    )
    scratch = (
        2 * _padded_bytes((S, D), bf)          # q_s, v_s
        + _padded_bytes((D, S), bf)            # kT_s
        + _padded_bytes((D, 3 * D), bf)        # wqkv (single-buffered)
        + _padded_bytes((D, D), bf)            # wo
        + _padded_bytes((D, d2), bf)           # g1w
    )
    live = (
        _padded_bytes((S, 3 * D), f32)         # qt==0 projection result
        + 4 * _padded_bytes((q_tile, S), f32)  # per-head scores / probs + running mean
        + 6 * _padded_bytes((q_tile, D), f32)  # o_cat / proj / y / yn / h1 temporaries
    )
    est = 2 * pipelined + scratch + live + 4 * _MIB
    # cap below v7x's 64 MiB per-TC VMEM to leave compiler-internal headroom
    return int(min(max(est, 32 * _MIB), 48 * _MIB))


def _prepare_fused(params, num_heads):
    """Fused / pre-scaled weight layouts (wrapper-side constant plumbing)."""
    D = params["wq"].shape[0]
    hd = D // num_heads
    scale = 1.0 / math.sqrt(hd)
    bf = jnp.bfloat16
    wqkv = jnp.concatenate(
        [params["wq"] * scale, params["wk"], params["wv"]], axis=1).astype(bf)
    b = params["bqkv"]
    bqkv = jnp.concatenate([b[0:1] * scale, b[1:3]], axis=0).reshape(1, 3 * D)
    wo = params["wo"].astype(bf)
    g1w = params["g1w"].astype(bf)
    return wqkv, bqkv, wo, g1w


def pathway_attention(x, params, num_heads=8, q_tile=None):
    """x: (B, S, D) float32. Returns (filtered_features (B,S,D) f32, attn_weights (B,S,S) bf16)."""
    B, S, D = x.shape
    assert D % num_heads == 0
    d2 = D // 2

    if q_tile is None:
        if S <= 256:
            q_tile = S
        elif S % 256 == 0:
            q_tile = 256          # saturates the 256-wide MXU on v6e/v7x (use 128 on v5e)
        elif S % 128 == 0:
            q_tile = 128
        else:
            q_tile = S
    assert S % q_tile == 0, "S must be divisible by the query tile"
    assert q_tile == S or q_tile % 16 == 0, "q_tile must be 16-aligned (bf16 sublane pack)"
    n_qt = S // q_tile

    bf = jnp.bfloat16
    wqkv, bqkv, wo, g1w = _prepare_fused(params, num_heads)
    x_bf = x.astype(bf)           # QKV-projection operand only; residual stays f32

    kernel = functools.partial(_pathway_attention_kernel, num_heads=num_heads)

    def fixed(shape):
        zeros = (0,) * len(shape)
        return pl.BlockSpec(shape, lambda b, t, _z=zeros: _z)

    any_spec = pl.BlockSpec(memory_space=pl.ANY)

    grid_spec = pltpu.PrefetchScalarGridSpec(
        num_scalar_prefetch=0,
        grid=(B, n_qt),
        in_specs=[
            pl.BlockSpec((1, q_tile, D), lambda b, t: (b, t, 0)),   # x (query tile, f32)
            pl.BlockSpec((1, S, D), lambda b, t: (b, 0, 0)),        # x (full, bf16)
            any_spec,                    # wqkv (bf16) -> manual one-time DMA
            fixed((1, 3 * D)),           # bqkv
            any_spec,                    # wo (bf16)   -> manual one-time DMA
            fixed((1, D)),               # bo
            fixed((1, D)),               # ln gamma
            fixed((1, D)),               # ln beta
            any_spec,                    # gate1 W (bf16) -> manual one-time DMA
            fixed((1, d2)),              # gate1 b
            fixed((1, d2)),              # gate2 W (row)
            fixed((1, 1)),               # gate2 b
        ],
        out_specs=[
            pl.BlockSpec((1, q_tile, D), lambda b, t: (b, t, 0)),
            pl.BlockSpec((1, q_tile, S), lambda b, t: (b, t, 0)),
        ],
        scratch_shapes=[
            pltpu.VMEM((S, D), bf),          # q_s
            pltpu.VMEM((D, S), bf),          # kT_s
            pltpu.VMEM((S, D), bf),          # v_s
            pltpu.VMEM((D, 3 * D), bf),      # wqkv (single-buffered)
            pltpu.VMEM((D, D), bf),          # wo
            pltpu.VMEM((D, d2), bf),         # g1w
            pltpu.SemaphoreType.DMA((3,)),   # weight-load semaphores
        ],
    )

    out, attn = pl.pallas_call(
        kernel,
        out_shape=(
            jax.ShapeDtypeStruct((B, S, D), jnp.float32),
            jax.ShapeDtypeStruct((B, S, S), jnp.bfloat16),
        ),
        grid_spec=grid_spec,
        compiler_params=pltpu.CompilerParams(
            # batch axis -> megacore; query-tile axis carries the cached K/V/weights
            # scratch (written at qt==0, read by later tiles) so it must be sequential.
            dimension_semantics=("parallel", "arbitrary"),
            vmem_limit_bytes=_vmem_limit_bytes(S, D, q_tile),
        ),
    )(
        x, x_bf,
        wqkv, bqkv, wo,
        params["bo"], params["ln_g"], params["ln_b"],
        g1w, params["g1b"], params["g2w"], params["g2b"],
    )
    return out, attn


def _reference(x, params, num_heads):
    """Pure-JAX reference mirroring the kernel's bf16-matmul / f32-accumulate policy."""
    bf = jnp.bfloat16
    B, S, D = x.shape
    H = num_heads
    hd = D // H
    wqkv, bqkv, wo, g1w = _prepare_fused(params, num_heads)

    qkv = jnp.einsum("bsd,de->bse", x.astype(bf), wqkv,
                     preferred_element_type=jnp.float32) + bqkv
    q = qkv[..., :D].astype(bf)            # 1/sqrt(hd) already folded into wq/bq
    k = qkv[..., D:2 * D].astype(bf)
    v = qkv[..., 2 * D:].astype(bf)
    q = q.reshape(B, S, H, hd).transpose(0, 2, 1, 3)
    k = k.reshape(B, S, H, hd).transpose(0, 2, 1, 3)
    v = v.reshape(B, S, H, hd).transpose(0, 2, 1, 3)

    s = jnp.einsum("bhqd,bhkd->bhqk", q, k, preferred_element_type=jnp.float32)
    p = jax.nn.softmax(s, axis=-1)
    attn_w = p.mean(axis=1)

    o = jnp.einsum("bhqk,bhkd->bhqd", p.astype(bf), v,
                   preferred_element_type=jnp.float32)
    o = o.transpose(0, 2, 1, 3).reshape(B, S, D).astype(bf)
    attn_out = jnp.einsum("bsd,de->bse", o, wo,
                          preferred_element_type=jnp.float32) + params["bo"]

    y = attn_out + x
    mean = y.mean(-1, keepdims=True)
    var = ((y - mean) ** 2).mean(-1, keepdims=True)
    yn = (y - mean) / jnp.sqrt(var + 1e-5) * params["ln_g"] + params["ln_b"]

    h1 = jnp.maximum(
        jnp.einsum("bsd,df->bsf", yn.astype(bf), g1w,
                   preferred_element_type=jnp.float32) + params["g1b"], 0.0)
    gate = jax.nn.sigmoid(jnp.sum(h1 * params["g2w"], axis=-1, keepdims=True)
                          + params["g2b"])
    return yn * gate, attn_w


def make_params(key, d_model):
    D = d_model
    ks = jax.random.split(key, 12)
    s = 0.1
    return {
        "wq": s * jax.random.normal(ks[0], (D, D), jnp.float32),
        "wk": s * jax.random.normal(ks[1], (D, D), jnp.float32),
        "wv": s * jax.random.normal(ks[2], (D, D), jnp.float32),
        "bqkv": s * jax.random.normal(ks[3], (3, D), jnp.float32),
        "wo": s * jax.random.normal(ks[4], (D, D), jnp.float32),
        "bo": s * jax.random.normal(ks[5], (1, D), jnp.float32),
        "ln_g": 1.0 + s * jax.random.normal(ks[6], (1, D), jnp.float32),
        "ln_b": s * jax.random.normal(ks[7], (1, D), jnp.float32),
        "g1w": s * jax.random.normal(ks[8], (D, D // 2), jnp.float32),
        "g1b": s * jax.random.normal(ks[9], (1, D // 2), jnp.float32),
        "g2w": s * jax.random.normal(ks[10], (1, D // 2), jnp.float32),
        "g2b": s * jax.random.normal(ks[11], (1, 1), jnp.float32),
    }


def _check(name, got, want, atol=1e-2, rtol=1e-2):
    # tolerance covers pl.reciprocal(approx=True) in the softmax and the bf16 attn output
    assert jnp.allclose(got, want, atol=atol, rtol=rtol), (
        f"{name} mismatch: max abs err {jnp.max(jnp.abs(got - want))}")


if __name__ == "__main__":
    key = jax.random.PRNGKey(0)
    kx1, kx2, kp = jax.random.split(key, 3)

    D, H = 32, 8
    params = make_params(kp, D)

    # test 1: single query tile (B=2, S=8, q_tile=S)
    x1 = jax.random.normal(kx1, (2, 8, D), jnp.float32)
    out1, attn1 = pathway_attention(x1, params, num_heads=H)
    out1 = jax.block_until_ready(out1)
    attn1 = jax.block_until_ready(attn1)
    ref_out1, ref_attn1 = _reference(x1, params, H)
    _check("out (S=8)", out1, ref_out1)
    _check("attn (S=8)", attn1, ref_attn1)

    # test 2: multiple 16-aligned query tiles sharing cached K/V + single-buffered weights
    x2 = jax.random.normal(kx2, (2, 32, D), jnp.float32)
    out2, attn2 = pathway_attention(x2, params, num_heads=H, q_tile=16)
    out2 = jax.block_until_ready(out2)
    attn2 = jax.block_until_ready(attn2)
    ref_out2, ref_attn2 = _reference(x2, params, H)
    _check("out (S=32)", out2, ref_out2)
    _check("attn (S=32)", attn2, ref_attn2)

    print("KERNEL_OK")
</pallas_src>

<mosaic_0001>
module attributes {stable_mosaic.version = 11 : i64} {
  func.func @_pathway_attention_kernel(%arg0: i32, %arg1: i32, %arg2: memref<1x8x32xf32, #tpu.memory_space<vmem>>, %arg3: memref<1x8x32xbf16, #tpu.memory_space<vmem>>, %arg4: memref<32x96xbf16, #tpu.memory_space<any>>, %arg5: memref<1x96xf32, #tpu.memory_space<vmem>>, %arg6: memref<32x32xbf16, #tpu.memory_space<any>>, %arg7: memref<1x32xf32, #tpu.memory_space<vmem>>, %arg8: memref<1x32xf32, #tpu.memory_space<vmem>>, %arg9: memref<1x32xf32, #tpu.memory_space<vmem>>, %arg10: memref<32x16xbf16, #tpu.memory_space<any>>, %arg11: memref<1x16xf32, #tpu.memory_space<vmem>>, %arg12: memref<1x16xf32, #tpu.memory_space<vmem>>, %arg13: memref<1x1xf32, #tpu.memory_space<vmem>>, %arg14: memref<1x8x32xf32, #tpu.memory_space<vmem>>, %arg15: memref<1x8x8xbf16, #tpu.memory_space<vmem>>, %arg16: memref<8x32xbf16, #tpu.memory_space<vmem>>, %arg17: memref<32x8xbf16, #tpu.memory_space<vmem>>, %arg18: memref<8x32xbf16, #tpu.memory_space<vmem>>, %arg19: memref<32x96xbf16, #tpu.memory_space<vmem>>, %arg20: memref<32x32xbf16, #tpu.memory_space<vmem>>, %arg21: memref<32x16xbf16, #tpu.memory_space<vmem>>, %arg22: memref<3x!tpu.dma_semaphore, #tpu.memory_space<semaphore_mem>>) attributes {dimension_semantics = [#tpu.dimension_semantics<parallel>, #tpu.dimension_semantics<arbitrary>], iteration_bounds = array<i64: 2, 1>, scalar_prefetch = 0 : i64, scratch_operands = 7 : i64, tpu.core_type = #tpu.core_type<tc>, window_params = [{transform_indices = @transform_0, window_bounds = array<i64: 1, 8, 32>}, {transform_indices = @transform_1, window_bounds = array<i64: 1, 8, 32>}, {}, {pipeline_mode = #tpu.pipeline_mode<synchronous>, transform_indices = @transform_3, window_bounds = array<i64: 1, 96>}, {}, {pipeline_mode = #tpu.pipeline_mode<synchronous>, transform_indices = @transform_5, window_bounds = array<i64: 1, 32>}, {pipeline_mode = #tpu.pipeline_mode<synchronous>, transform_indices = @transform_6, window_bounds = array<i64: 1, 32>}, {pipeline_mode = #tpu.pipeline_mode<synchronous>, transform_indices = @transform_7, window_bounds = array<i64: 1, 32>}, {}, {pipeline_mode = #tpu.pipeline_mode<synchronous>, transform_indices = @transform_9, window_bounds = array<i64: 1, 16>}, {pipeline_mode = #tpu.pipeline_mode<synchronous>, transform_indices = @transform_10, window_bounds = array<i64: 1, 16>}, {pipeline_mode = #tpu.pipeline_mode<synchronous>, transform_indices = @transform_11, window_bounds = array<i64: 1, 1>}, {transform_indices = @transform_12, window_bounds = array<i64: 1, 8, 32>}, {transform_indices = @transform_13, window_bounds = array<i64: 1, 8, 8>}]} {
    %c0_i32 = arith.constant 0 : i32
    %0 = arith.cmpi eq, %arg1, %c0_i32 : i32
    %1 = arith.extui %0 : i1 to i32
    %c0_i32_0 = arith.constant 0 : i32
    %2 = arith.cmpi ne, %1, %c0_i32_0 : i32
    scf.if %2 {
      %c0_i32_101 = arith.constant 0 : i32
      %218 = tpu.memref_slice %arg22[%c0_i32_101] : memref<3x!tpu.dma_semaphore, #tpu.memory_space<semaphore_mem>> -> memref<1x!tpu.dma_semaphore, #tpu.memory_space<semaphore_mem>>
      %219 = tpu.memref_squeeze %218 : memref<1x!tpu.dma_semaphore, #tpu.memory_space<semaphore_mem>> -> memref<!tpu.dma_semaphore, #tpu.memory_space<semaphore_mem>>
      tpu.enqueue_dma source(%arg4 : memref<32x96xbf16, #tpu.memory_space<any>>) target(%arg19 : memref<32x96xbf16, #tpu.memory_space<vmem>>) target_semaphore(%219 : memref<!tpu.dma_semaphore, #tpu.memory_space<semaphore_mem>>)
      %c1_i32 = arith.constant 1 : i32
      %220 = tpu.memref_slice %arg22[%c1_i32] : memref<3x!tpu.dma_semaphore, #tpu.memory_space<semaphore_mem>> -> memref<1x!tpu.dma_semaphore, #tpu.memory_space<semaphore_mem>>
      %221 = tpu.memref_squeeze %220 : memref<1x!tpu.dma_semaphore, #tpu.memory_space<semaphore_mem>> -> memref<!tpu.dma_semaphore, #tpu.memory_space<semaphore_mem>>
      tpu.enqueue_dma source(%arg6 : memref<32x32xbf16, #tpu.memory_space<any>>) target(%arg20 : memref<32x32xbf16, #tpu.memory_space<vmem>>) target_semaphore(%221 : memref<!tpu.dma_semaphore, #tpu.memory_space<semaphore_mem>>)
      %c2_i32 = arith.constant 2 : i32
      %222 = tpu.memref_slice %arg22[%c2_i32] : memref<3x!tpu.dma_semaphore, #tpu.memory_space<semaphore_mem>> -> memref<1x!tpu.dma_semaphore, #tpu.memory_space<semaphore_mem>>
      %223 = tpu.memref_squeeze %222 : memref<1x!tpu.dma_semaphore, #tpu.memory_space<semaphore_mem>> -> memref<!tpu.dma_semaphore, #tpu.memory_space<semaphore_mem>>
      tpu.enqueue_dma source(%arg10 : memref<32x16xbf16, #tpu.memory_space<any>>) target(%arg21 : memref<32x16xbf16, #tpu.memory_space<vmem>>) target_semaphore(%223 : memref<!tpu.dma_semaphore, #tpu.memory_space<semaphore_mem>>)
      %c0_i32_102 = arith.constant 0 : i32
      %224 = tpu.memref_slice %arg22[%c0_i32_102] : memref<3x!tpu.dma_semaphore, #tpu.memory_space<semaphore_mem>> -> memref<1x!tpu.dma_semaphore, #tpu.memory_space<semaphore_mem>>
      %225 = tpu.memref_squeeze %224 : memref<1x!tpu.dma_semaphore, #tpu.memory_space<semaphore_mem>> -> memref<!tpu.dma_semaphore, #tpu.memory_space<semaphore_mem>>
      tpu.wait_dma2 semaphore(%225 : memref<!tpu.dma_semaphore, #tpu.memory_space<semaphore_mem>>) src(%arg4 : memref<32x96xbf16, #tpu.memory_space<any>>) dst(%arg19 : memref<32x96xbf16, #tpu.memory_space<vmem>>)
      %c1_i32_103 = arith.constant 1 : i32
      %226 = tpu.memref_slice %arg22[%c1_i32_103] : memref<3x!tpu.dma_semaphore, #tpu.memory_space<semaphore_mem>> -> memref<1x!tpu.dma_semaphore, #tpu.memory_space<semaphore_mem>>
      %227 = tpu.memref_squeeze %226 : memref<1x!tpu.dma_semaphore, #tpu.memory_space<semaphore_mem>> -> memref<!tpu.dma_semaphore, #tpu.memory_space<semaphore_mem>>
      tpu.wait_dma2 semaphore(%227 : memref<!tpu.dma_semaphore, #tpu.memory_space<semaphore_mem>>) src(%arg6 : memref<32x32xbf16, #tpu.memory_space<any>>) dst(%arg20 : memref<32x32xbf16, #tpu.memory_space<vmem>>)
      %c2_i32_104 = arith.constant 2 : i32
      %228 = tpu.memref_slice %arg22[%c2_i32_104] : memref<3x!tpu.dma_semaphore, #tpu.memory_space<semaphore_mem>> -> memref<1x!tpu.dma_semaphore, #tpu.memory_space<semaphore_mem>>
      %229 = tpu.memref_squeeze %228 : memref<1x!tpu.dma_semaphore, #tpu.memory_space<semaphore_mem>> -> memref<!tpu.dma_semaphore, #tpu.memory_space<semaphore_mem>>
      tpu.wait_dma2 semaphore(%229 : memref<!tpu.dma_semaphore, #tpu.memory_space<semaphore_mem>>) src(%arg10 : memref<32x16xbf16, #tpu.memory_space<any>>) dst(%arg21 : memref<32x16xbf16, #tpu.memory_space<vmem>>)
      %c0_105 = arith.constant 0 : index
      %c0_106 = arith.constant 0 : index
      %c0_107 = arith.constant 0 : index
      %230 = vector.load %arg3[%c0_105, %c0_106, %c0_107] : memref<1x8x32xbf16, #tpu.memory_space<vmem>>, vector<1x8x32xbf16>
      %231 = vector.shape_cast %230 : vector<1x8x32xbf16> to vector<8x32xbf16>
      %c0_108 = arith.constant 0 : index
      %c0_109 = arith.constant 0 : index
      %232 = vector.load %arg19[%c0_108, %c0_109] : memref<32x96xbf16, #tpu.memory_space<vmem>>, vector<32x96xbf16>
      %cst_110 = arith.constant dense<0.000000e+00> : vector<8x96xf32>
      %233 = tpu.matmul %231, %232, %cst_110 {dimension_numbers = #tpu.dot_dimension_numbers<[1], [0], [0], [1], [0, 0, 1, 1], [], []>} : vector<8x32xbf16>, vector<32x96xbf16>, vector<8x96xf32> -> vector<8x96xf32>
      %c0_111 = arith.constant 0 : index
      %c0_112 = arith.constant 0 : index
      %234 = vector.load %arg5[%c0_111, %c0_112] : memref<1x96xf32, #tpu.memory_space<vmem>>, vector<1x96xf32>
      %235 = vector.broadcast %234 : vector<1x96xf32> to vector<8x96xf32>
      %236 = arith.addf %233, %235 : vector<8x96xf32>
      %237 = vector.extract_strided_slice %236 {offsets = [0, 0], sizes = [8, 32], strides = [1, 1]} : vector<8x96xf32> to vector<8x32xf32>
      %238 = arith.truncf %237 : vector<8x32xf32> to vector<8x32xbf16>
      %c0_113 = arith.constant 0 : index
      %c0_114 = arith.constant 0 : index
      %239 = vector.load %arg16[%c0_113, %c0_114] : memref<8x32xbf16, #tpu.memory_space<vmem>>, vector<8x32xbf16>
      tpu.vector_store %arg16[%c0_113, %c0_114], %238 {strides = array<i32>} : memref<8x32xbf16, #tpu.memory_space<vmem>>, vector<8x32xbf16>,
      %240 = vector.extract_strided_slice %236 {offsets = [0, 32], sizes = [8, 32], strides = [1, 1]} : vector<8x96xf32> to vector<8x32xf32>
      %241 = tpu.transpose %240, [1, 0] : vector<8x32xf32> -> vector<32x8xf32>
      %242 = arith.truncf %241 : vector<32x8xf32> to vector<32x8xbf16>
      %c0_115 = arith.constant 0 : index
      %c0_116 = arith.constant 0 : index
      %243 = vector.load %arg17[%c0_115, %c0_116] : memref<32x8xbf16, #tpu.memory_space<vmem>>, vector<32x8xbf16>
      tpu.vector_store %arg17[%c0_115, %c0_116], %242 {strides = array<i32>} : memref<32x8xbf16, #tpu.memory_space<vmem>>, vector<32x8xbf16>,
      %244 = vector.extract_strided_slice %236 {offsets = [0, 64], sizes = [8, 32], strides = [1, 1]} : vector<8x96xf32> to vector<8x32xf32>
      %245 = arith.truncf %244 : vector<8x32xf32> to vector<8x32xbf16>
      %c0_117 = arith.constant 0 : index
      %c0_118 = arith.constant 0 : index
      %246 = vector.load %arg18[%c0_117, %c0_118] : memref<8x32xbf16, #tpu.memory_space<vmem>>, vector<8x32xbf16>
      tpu.vector_store %arg18[%c0_117, %c0_118], %245 {strides = array<i32>} : memref<8x32xbf16, #tpu.memory_space<vmem>>, vector<8x32xbf16>,
    } else {
    }
    %c8_i32 = arith.constant 8 : i32
    %3 = arith.muli %arg1, %c8_i32 : i32
    %4 = tpu.assume_multiple %3, 8 : i32
    %cst = arith.constant 0.000000e+00 : f32
    %5 = vector.broadcast %cst : f32 to vector<8x8xf32>
    %6 = arith.index_cast %4 : i32 to index
    %c0 = arith.constant 0 : index
    %7 = vector.load %arg16[%6, %c0] : memref<8x32xbf16, #tpu.memory_space<vmem>>, vector<8x4xbf16>
    %c0_1 = arith.constant 0 : index
    %c0_2 = arith.constant 0 : index
    %8 = vector.load %arg17[%c0_1, %c0_2] : memref<32x8xbf16, #tpu.memory_space<vmem>>, vector<4x8xbf16>
    %cst_3 = arith.constant dense<0.000000e+00> : vector<8x8xf32>
    %9 = tpu.matmul %7, %8, %cst_3 {dimension_numbers = #tpu.dot_dimension_numbers<[1], [0], [0], [1], [0, 0, 1, 1], [], []>} : vector<8x4xbf16>, vector<4x8xbf16>, vector<8x8xf32> -> vector<8x8xf32>
    %cst_4 = arith.constant dense<0xFF800000> : vector<8xf32>
    %10 = vector.multi_reduction <maximumf>, %9, %cst_4 [1] : vector<8x8xf32> to vector<8xf32>
    %11 = vector.shape_cast %10 : vector<8xf32> to vector<8x1xf32>
    %12 = vector.broadcast %11 : vector<8x1xf32> to vector<8x8xf32>
    %13 = arith.subf %9, %12 : vector<8x8xf32>
    %14 = math.exp %13 : vector<8x8xf32>
    %cst_5 = arith.constant dense<0.000000e+00> : vector<8xf32>
    %15 = vector.multi_reduction <add>, %14, %cst_5 [1] : vector<8x8xf32> to vector<8xf32>
    %16 = vector.shape_cast %15 : vector<8xf32> to vector<8x1xf32>
    %17 = tpu.reciprocal %16 {approx = true} : vector<8x1xf32> -> vector<8x1xf32>
    %18 = vector.broadcast %17 : vector<8x1xf32> to vector<8x8xf32>
    %19 = arith.mulf %14, %18 : vector<8x8xf32>
    %20 = arith.addf %5, %19 : vector<8x8xf32>
    %c0_6 = arith.constant 0 : index
    %c0_7 = arith.constant 0 : index
    %21 = vector.load %arg18[%c0_6, %c0_7] : memref<8x32xbf16, #tpu.memory_space<vmem>>, vector<8x4xbf16>
    %22 = arith.truncf %19 : vector<8x8xf32> to vector<8x8xbf16>
    %cst_8 = arith.constant dense<0.000000e+00> : vector<8x4xf32>
    %23 = tpu.matmul %22, %21, %cst_8 {dimension_numbers = #tpu.dot_dimension_numbers<[1], [0], [0], [1], [0, 0, 1, 1], [], []>} : vector<8x8xbf16>, vector<8x4xbf16>, vector<8x4xf32> -> vector<8x4xf32>
    %24 = arith.index_cast %4 : i32 to index
    %c4 = arith.constant 4 : index
    %25 = vector.load %arg16[%24, %c4] : memref<8x32xbf16, #tpu.memory_space<vmem>>, vector<8x4xbf16>
    %c4_9 = arith.constant 4 : index
    %c0_10 = arith.constant 0 : index
    %26 = vector.load %arg17[%c4_9, %c0_10] : memref<32x8xbf16, #tpu.memory_space<vmem>>, vector<4x8xbf16>
    %cst_11 = arith.constant dense<0.000000e+00> : vector<8x8xf32>
    %27 = tpu.matmul %25, %26, %cst_11 {dimension_numbers = #tpu.dot_dimension_numbers<[1], [0], [0], [1], [0, 0, 1, 1], [], []>} : vector<8x4xbf16>, vector<4x8xbf16>, vector<8x8xf32> -> vector<8x8xf32>
    %cst_12 = arith.constant dense<0xFF800000> : vector<8xf32>
    %28 = vector.multi_reduction <maximumf>, %27, %cst_12 [1] : vector<8x8xf32> to vector<8xf32>
    %29 = vector.shape_cast %28 : vector<8xf32> to vector<8x1xf32>
    %30 = vector.broadcast %29 : vector<8x1xf32> to vector<8x8xf32>
    %31 = arith.subf %27, %30 : vector<8x8xf32>
    %32 = math.exp %31 : vector<8x8xf32>
    %cst_13 = arith.constant dense<0.000000e+00> : vector<8xf32>
    %33 = vector.multi_reduction <add>, %32, %cst_13 [1] : vector<8x8xf32> to vector<8xf32>
    %34 = vector.shape_cast %33 : vector<8xf32> to vector<8x1xf32>
    %35 = tpu.reciprocal %34 {approx = true} : vector<8x1xf32> -> vector<8x1xf32>
    %36 = vector.broadcast %35 : vector<8x1xf32> to vector<8x8xf32>
    %37 = arith.mulf %32, %36 : vector<8x8xf32>
    %38 = arith.addf %20, %37 : vector<8x8xf32>
    %c0_14 = arith.constant 0 : index
    %c4_15 = arith.constant 4 : index
    %39 = vector.load %arg18[%c0_14, %c4_15] : memref<8x32xbf16, #tpu.memory_space<vmem>>, vector<8x4xbf16>
    %40 = arith.truncf %37 : vector<8x8xf32> to vector<8x8xbf16>
    %cst_16 = arith.constant dense<0.000000e+00> : vector<8x4xf32>
    %41 = tpu.matmul %40, %39, %cst_16 {dimension_numbers = #tpu.dot_dimension_numbers<[1], [0], [0], [1], [0, 0, 1, 1], [], []>} : vector<8x8xbf16>, vector<8x4xbf16>, vector<8x4xf32> -> vector<8x4xf32>
    %42 = arith.index_cast %4 : i32 to index
    %c8 = arith.constant 8 : index
    %43 = vector.load %arg16[%42, %c8] : memref<8x32xbf16, #tpu.memory_space<vmem>>, vector<8x4xbf16>
    %c8_17 = arith.constant 8 : index
    %c0_18 = arith.constant 0 : index
    %44 = vector.load %arg17[%c8_17, %c0_18] : memref<32x8xbf16, #tpu.memory_space<vmem>>, vector<4x8xbf16>
    %cst_19 = arith.constant dense<0.000000e+00> : vector<8x8xf32>
    %45 = tpu.matmul %43, %44, %cst_19 {dimension_numbers = #tpu.dot_dimension_numbers<[1], [0], [0], [1], [0, 0, 1, 1], [], []>} : vector<8x4xbf16>, vector<4x8xbf16>, vector<8x8xf32> -> vector<8x8xf32>
    %cst_20 = arith.constant dense<0xFF800000> : vector<8xf32>
    %46 = vector.multi_reduction <maximumf>, %45, %cst_20 [1] : vector<8x8xf32> to vector<8xf32>
    %47 = vector.shape_cast %46 : vector<8xf32> to vector<8x1xf32>
    %48 = vector.broadcast %47 : vector<8x1xf32> to vector<8x8xf32>
    %49 = arith.subf %45, %48 : vector<8x8xf32>
    %50 = math.exp %49 : vector<8x8xf32>
    %cst_21 = arith.constant dense<0.000000e+00> : vector<8xf32>
    %51 = vector.multi_reduction <add>, %50, %cst_21 [1] : vector<8x8xf32> to vector<8xf32>
    %52 = vector.shape_cast %51 : vector<8xf32> to vector<8x1xf32>
    %53 = tpu.reciprocal %52 {approx = true} : vector<8x1xf32> -> vector<8x1xf32>
    %54 = vector.broadcast %53 : vector<8x1xf32> to vector<8x8xf32>
    %55 = arith.mulf %50, %54 : vector<8x8xf32>
    %56 = arith.addf %38, %55 : vector<8x8xf32>
    %c0_22 = arith.constant 0 : index
    %c8_23 = arith.constant 8 : index
    %57 = vector.load %arg18[%c0_22, %c8_23] : memref<8x32xbf16, #tpu.memory_space<vmem>>, vector<8x4xbf16>
    %58 = arith.truncf %55 : vector<8x8xf32> to vector<8x8xbf16>
    %cst_24 = arith.constant dense<0.000000e+00> : vector<8x4xf32>
    %59 = tpu.matmul %58, %57, %cst_24 {dimension_numbers = #tpu.dot_dimension_numbers<[1], [0], [0], [1], [0, 0, 1, 1], [], []>} : vector<8x8xbf16>, vector<8x4xbf16>, vector<8x4xf32> -> vector<8x4xf32>
    %60 = arith.index_cast %4 : i32 to index
    %c12 = arith.constant 12 : index
    %61 = vector.load %arg16[%60, %c12] : memref<8x32xbf16, #tpu.memory_space<vmem>>, vector<8x4xbf16>
    %c12_25 = arith.constant 12 : index
    %c0_26 = arith.constant 0 : index
    %62 = vector.load %arg17[%c12_25, %c0_26] : memref<32x8xbf16, #tpu.memory_space<vmem>>, vector<4x8xbf16>
    %cst_27 = arith.constant dense<0.000000e+00> : vector<8x8xf32>
    %63 = tpu.matmul %61, %62, %cst_27 {dimension_numbers = #tpu.dot_dimension_numbers<[1], [0], [0], [1], [0, 0, 1, 1], [], []>} : vector<8x4xbf16>, vector<4x8xbf16>, vector<8x8xf32> -> vector<8x8xf32>
    %cst_28 = arith.constant dense<0xFF800000> : vector<8xf32>
    %64 = vector.multi_reduction <maximumf>, %63, %cst_28 [1] : vector<8x8xf32> to vector<8xf32>
    %65 = vector.shape_cast %64 : vector<8xf32> to vector<8x1xf32>
    %66 = vector.broadcast %65 : vector<8x1xf32> to vector<8x8xf32>
    %67 = arith.subf %63, %66 : vector<8x8xf32>
    %68 = math.exp %67 : vector<8x8xf32>
    %cst_29 = arith.constant dense<0.000000e+00> : vector<8xf32>
    %69 = vector.multi_reduction <add>, %68, %cst_29 [1] : vector<8x8xf32> to vector<8xf32>
    %70 = vector.shape_cast %69 : vector<8xf32> to vector<8x1xf32>
    %71 = tpu.reciprocal %70 {approx = true} : vector<8x1xf32> -> vector<8x1xf32>
    %72 = vector.broadcast %71 : vector<8x1xf32> to vector<8x8xf32>
    %73 = arith.mulf %68, %72 : vector<8x8xf32>
    %74 = arith.addf %56, %73 : vector<8x8xf32>
    %c0_30 = arith.constant 0 : index
    %c12_31 = arith.constant 12 : index
    %75 = vector.load %arg18[%c0_30, %c12_31] : memref<8x32xbf16, #tpu.memory_space<vmem>>, vector<8x4xbf16>
    %76 = arith.truncf %73 : vector<8x8xf32> to vector<8x8xbf16>
    %cst_32 = arith.constant dense<0.000000e+00> : vector<8x4xf32>
    %77 = tpu.matmul %76, %75, %cst_32 {dimension_numbers = #tpu.dot_dimension_numbers<[1], [0], [0], [1], [0, 0, 1, 1], [], []>} : vector<8x8xbf16>, vector<8x4xbf16>, vector<8x4xf32> -> vector<8x4xf32>
    %78 = arith.index_cast %4 : i32 to index
    %c16 = arith.constant 16 : index
    %79 = vector.load %arg16[%78, %c16] : memref<8x32xbf16, #tpu.memory_space<vmem>>, vector<8x4xbf16>
    %c16_33 = arith.constant 16 : index
    %c0_34 = arith.constant 0 : index
    %80 = vector.load %arg17[%c16_33, %c0_34] : memref<32x8xbf16, #tpu.memory_space<vmem>>, vector<4x8xbf16>
    %cst_35 = arith.constant dense<0.000000e+00> : vector<8x8xf32>
    %81 = tpu.matmul %79, %80, %cst_35 {dimension_numbers = #tpu.dot_dimension_numbers<[1], [0], [0], [1], [0, 0, 1, 1], [], []>} : vector<8x4xbf16>, vector<4x8xbf16>, vector<8x8xf32> -> vector<8x8xf32>
    %cst_36 = arith.constant dense<0xFF800000> : vector<8xf32>
    %82 = vector.multi_reduction <maximumf>, %81, %cst_36 [1] : vector<8x8xf32> to vector<8xf32>
    %83 = vector.shape_cast %82 : vector<8xf32> to vector<8x1xf32>
    %84 = vector.broadcast %83 : vector<8x1xf32> to vector<8x8xf32>
    %85 = arith.subf %81, %84 : vector<8x8xf32>
    %86 = math.exp %85 : vector<8x8xf32>
    %cst_37 = arith.constant dense<0.000000e+00> : vector<8xf32>
    %87 = vector.multi_reduction <add>, %86, %cst_37 [1] : vector<8x8xf32> to vector<8xf32>
    %88 = vector.shape_cast %87 : vector<8xf32> to vector<8x1xf32>
    %89 = tpu.reciprocal %88 {approx = true} : vector<8x1xf32> -> vector<8x1xf32>
    %90 = vector.broadcast %89 : vector<8x1xf32> to vector<8x8xf32>
    %91 = arith.mulf %86, %90 : vector<8x8xf32>
    %92 = arith.addf %74, %91 : vector<8x8xf32>
    %c0_38 = arith.constant 0 : index
    %c16_39 = arith.constant 16 : index
    %93 = vector.load %arg18[%c0_38, %c16_39] : memref<8x32xbf16, #tpu.memory_space<vmem>>, vector<8x4xbf16>
    %94 = arith.truncf %91 : vector<8x8xf32> to vector<8x8xbf16>
    %cst_40 = arith.constant dense<0.000000e+00> : vector<8x4xf32>
    %95 = tpu.matmul %94, %93, %cst_40 {dimension_numbers = #tpu.dot_dimension_numbers<[1], [0], [0], [1], [0, 0, 1, 1], [], []>} : vector<8x8xbf16>, vector<8x4xbf16>, vector<8x4xf32> -> vector<8x4xf32>
    %96 = arith.index_cast %4 : i32 to index
    %c20 = arith.constant 20 : index
    %97 = vector.load %arg16[%96, %c20] : memref<8x32xbf16, #tpu.memory_space<vmem>>, vector<8x4xbf16>
    %c20_41 = arith.constant 20 : index
    %c0_42 = arith.constant 0 : index
    %98 = vector.load %arg17[%c20_41, %c0_42] : memref<32x8xbf16, #tpu.memory_space<vmem>>, vector<4x8xbf16>
    %cst_43 = arith.constant dense<0.000000e+00> : vector<8x8xf32>
    %99 = tpu.matmul %97, %98, %cst_43 {dimension_numbers = #tpu.dot_dimension_numbers<[1], [0], [0], [1], [0, 0, 1, 1], [], []>} : vector<8x4xbf16>, vector<4x8xbf16>, vector<8x8xf32> -> vector<8x8xf32>
    %cst_44 = arith.constant dense<0xFF800000> : vector<8xf32>
    %100 = vector.multi_reduction <maximumf>, %99, %cst_44 [1] : vector<8x8xf32> to vector<8xf32>
    %101 = vector.shape_cast %100 : vector<8xf32> to vector<8x1xf32>
    %102 = vector.broadcast %101 : vector<8x1xf32> to vector<8x8xf32>
    %103 = arith.subf %99, %102 : vector<8x8xf32>
    %104 = math.exp %103 : vector<8x8xf32>
    %cst_45 = arith.constant dense<0.000000e+00> : vector<8xf32>
    %105 = vector.multi_reduction <add>, %104, %cst_45 [1] : vector<8x8xf32> to vector<8xf32>
    %106 = vector.shape_cast %105 : vector<8xf32> to vector<8x1xf32>
    %107 = tpu.reciprocal %106 {approx = true} : vector<8x1xf32> -> vector<8x1xf32>
    %108 = vector.broadcast %107 : vector<8x1xf32> to vector<8x8xf32>
    %109 = arith.mulf %104, %108 : vector<8x8xf32>
    %110 = arith.addf %92, %109 : vector<8x8xf32>
    %c0_46 = arith.constant 0 : index
    %c20_47 = arith.constant 20 : index
    %111 = vector.load %arg18[%c0_46, %c20_47] : memref<8x32xbf16, #tpu.memory_space<vmem>>, vector<8x4xbf16>
    %112 = arith.truncf %109 : vector<8x8xf32> to vector<8x8xbf16>
    %cst_48 = arith.constant dense<0.000000e+00> : vector<8x4xf32>
    %113 = tpu.matmul %112, %111, %cst_48 {dimension_numbers = #tpu.dot_dimension_numbers<[1], [0], [0], [1], [0, 0, 1, 1], [], []>} : vector<8x8xbf16>, vector<8x4xbf16>, vector<8x4xf32> -> vector<8x4xf32>
    %114 = arith.index_cast %4 : i32 to index
    %c24 = arith.constant 24 : index
    %115 = vector.load %arg16[%114, %c24] : memref<8x32xbf16, #tpu.memory_space<vmem>>, vector<8x4xbf16>
    %c24_49 = arith.constant 24 : index
    %c0_50 = arith.constant 0 : index
    %116 = vector.load %arg17[%c24_49, %c0_50] : memref<32x8xbf16, #tpu.memory_space<vmem>>, vector<4x8xbf16>
    %cst_51 = arith.constant dense<0.000000e+00> : vector<8x8xf32>
    %117 = tpu.matmul %115, %116, %cst_51 {dimension_numbers = #tpu.dot_dimension_numbers<[1], [0], [0], [1], [0, 0, 1, 1], [], []>} : vector<8x4xbf16>, vector<4x8xbf16>, vector<8x8xf32> -> vector<8x8xf32>
    %cst_52 = arith.constant dense<0xFF800000> : vector<8xf32>
    %118 = vector.multi_reduction <maximumf>, %117, %cst_52 [1] : vector<8x8xf32> to vector<8xf32>
    %119 = vector.shape_cast %118 : vector<8xf32> to vector<8x1xf32>
    %120 = vector.broadcast %119 : vector<8x1xf32> to vector<8x8xf32>
    %121 = arith.subf %117, %120 : vector<8x8xf32>
    %122 = math.exp %121 : vector<8x8xf32>
    %cst_53 = arith.constant dense<0.000000e+00> : vector<8xf32>
    %123 = vector.multi_reduction <add>, %122, %cst_53 [1] : vector<8x8xf32> to vector<8xf32>
    %124 = vector.shape_cast %123 : vector<8xf32> to vector<8x1xf32>
    %125 = tpu.reciprocal %124 {approx = true} : vector<8x1xf32> -> vector<8x1xf32>
    %126 = vector.broadcast %125 : vector<8x1xf32> to vector<8x8xf32>
    %127 = arith.mulf %122, %126 : vector<8x8xf32>
    %128 = arith.addf %110, %127 : vector<8x8xf32>
    %c0_54 = arith.constant 0 : index
    %c24_55 = arith.constant 24 : index
    %129 = vector.load %arg18[%c0_54, %c24_55] : memref<8x32xbf16, #tpu.memory_space<vmem>>, vector<8x4xbf16>
    %130 = arith.truncf %127 : vector<8x8xf32> to vector<8x8xbf16>
    %cst_56 = arith.constant dense<0.000000e+00> : vector<8x4xf32>
    %131 = tpu.matmul %130, %129, %cst_56 {dimension_numbers = #tpu.dot_dimension_numbers<[1], [0], [0], [1], [0, 0, 1, 1], [], []>} : vector<8x8xbf16>, vector<8x4xbf16>, vector<8x4xf32> -> vector<8x4xf32>
    %132 = arith.index_cast %4 : i32 to index
    %c28 = arith.constant 28 : index
    %133 = vector.load %arg16[%132, %c28] : memref<8x32xbf16, #tpu.memory_space<vmem>>, vector<8x4xbf16>
    %c28_57 = arith.constant 28 : index
    %c0_58 = arith.constant 0 : index
    %134 = vector.load %arg17[%c28_57, %c0_58] : memref<32x8xbf16, #tpu.memory_space<vmem>>, vector<4x8xbf16>
    %cst_59 = arith.constant dense<0.000000e+00> : vector<8x8xf32>
    %135 = tpu.matmul %133, %134, %cst_59 {dimension_numbers = #tpu.dot_dimension_numbers<[1], [0], [0], [1], [0, 0, 1, 1], [], []>} : vector<8x4xbf16>, vector<4x8xbf16>, vector<8x8xf32> -> vector<8x8xf32>
    %cst_60 = arith.constant dense<0xFF800000> : vector<8xf32>
    %136 = vector.multi_reduction <maximumf>, %135, %cst_60 [1] : vector<8x8xf32> to vector<8xf32>
    %137 = vector.shape_cast %136 : vector<8xf32> to vector<8x1xf32>
    %138 = vector.broadcast %137 : vector<8x1xf32> to vector<8x8xf32>
    %139 = arith.subf %135, %138 : vector<8x8xf32>
    %140 = math.exp %139 : vector<8x8xf32>
    %cst_61 = arith.constant dense<0.000000e+00> : vector<8xf32>
    %141 = vector.multi_reduction <add>, %140, %cst_61 [1] : vector<8x8xf32> to vector<8xf32>
    %142 = vector.shape_cast %141 : vector<8xf32> to vector<8x1xf32>
    %143 = tpu.reciprocal %142 {approx = true} : vector<8x1xf32> -> vector<8x1xf32>
    %144 = vector.broadcast %143 : vector<8x1xf32> to vector<8x8xf32>
    %145 = arith.mulf %140, %144 : vector<8x8xf32>
    %146 = arith.addf %128, %145 : vector<8x8xf32>
    %c0_62 = arith.constant 0 : index
    %c28_63 = arith.constant 28 : index
    %147 = vector.load %arg18[%c0_62, %c28_63] : memref<8x32xbf16, #tpu.memory_space<vmem>>, vector<8x4xbf16>
    %148 = arith.truncf %145 : vector<8x8xf32> to vector<8x8xbf16>
    %cst_64 = arith.constant dense<0.000000e+00> : vector<8x4xf32>
    %149 = tpu.matmul %148, %147, %cst_64 {dimension_numbers = #tpu.dot_dimension_numbers<[1], [0], [0], [1], [0, 0, 1, 1], [], []>} : vector<8x8xbf16>, vector<8x4xbf16>, vector<8x4xf32> -> vector<8x4xf32>
    %cst_65 = arith.constant 1.250000e-01 : f32
    %150 = vector.broadcast %cst_65 : f32 to vector<8x8xf32>
    %151 = arith.mulf %146, %150 : vector<8x8xf32>
    %152 = arith.truncf %151 : vector<8x8xf32> to vector<8x8xbf16>
    %c0_66 = arith.constant 0 : index
    %c0_67 = arith.constant 0 : index
    %c0_68 = arith.constant 0 : index
    %153 = vector.load %arg15[%c0_66, %c0_67, %c0_68] : memref<1x8x8xbf16, #tpu.memory_space<vmem>>, vector<1x8x8xbf16>
    %154 = vector.shape_cast %153 : vector<1x8x8xbf16> to vector<8x8xbf16>
    %155 = vector.shape_cast %152 : vector<8x8xbf16> to vector<1x8x8xbf16>
    tpu.vector_store %arg15[%c0_66, %c0_67, %c0_68], %155 {strides = array<i32>} : memref<1x8x8xbf16, #tpu.memory_space<vmem>>, vector<1x8x8xbf16>,
    %156 = tpu.concatenate %23, %41, %59, %77, %95, %113, %131, %149 in 1 : vector<8x4xf32>, vector<8x4xf32>, vector<8x4xf32>, vector<8x4xf32>, vector<8x4xf32>, vector<8x4xf32>, vector<8x4xf32>, vector<8x4xf32> -> vector<8x32xf32>
    %157 = arith.truncf %156 : vector<8x32xf32> to vector<8x32xbf16>
    %c0_69 = arith.constant 0 : index
    %c0_70 = arith.constant 0 : index
    %158 = vector.load %arg20[%c0_69, %c0_70] : memref<32x32xbf16, #tpu.memory_space<vmem>>, vector<32x32xbf16>
    %cst_71 = arith.constant dense<0.000000e+00> : vector<8x32xf32>
    %159 = tpu.matmul %157, %158, %cst_71 {dimension_numbers = #tpu.dot_dimension_numbers<[1], [0], [0], [1], [0, 0, 1, 1], [], []>} : vector<8x32xbf16>, vector<32x32xbf16>, vector<8x32xf32> -> vector<8x32xf32>
    %c0_72 = arith.constant 0 : index
    %c0_73 = arith.constant 0 : index
    %160 = vector.load %arg7[%c0_72, %c0_73] : memref<1x32xf32, #tpu.memory_space<vmem>>, vector<1x32xf32>
    %161 = vector.broadcast %160 : vector<1x32xf32> to vector<8x32xf32>
    %162 = arith.addf %159, %161 : vector<8x32xf32>
    %c0_74 = arith.constant 0 : index
    %c0_75 = arith.constant 0 : index
    %c0_76 = arith.constant 0 : index
    %163 = vector.load %arg2[%c0_74, %c0_75, %c0_76] : memref<1x8x32xf32, #tpu.memory_space<vmem>>, vector<1x8x32xf32>
    %164 = vector.shape_cast %163 : vector<1x8x32xf32> to vector<8x32xf32>
    %165 = arith.addf %162, %164 : vector<8x32xf32>
    %cst_77 = arith.constant dense<0.000000e+00> : vector<8xf32>
    %166 = vector.multi_reduction <add>, %165, %cst_77 [1] : vector<8x32xf32> to vector<8xf32>
    %167 = vector.shape_cast %166 : vector<8xf32> to vector<8x1xf32>
    %cst_78 = arith.constant 3.200000e+01 : f32
    %168 = vector.broadcast %cst_78 : f32 to vector<8x1xf32>
    %169 = arith.divf %167, %168 : vector<8x1xf32>
    %170 = vector.broadcast %169 : vector<8x1xf32> to vector<8x32xf32>
    %171 = arith.subf %165, %170 : vector<8x32xf32>
    %172 = vector.broadcast %169 : vector<8x1xf32> to vector<8x32xf32>
    %173 = arith.subf %165, %172 : vector<8x32xf32>
    %174 = arith.mulf %171, %173 : vector<8x32xf32>
    %cst_79 = arith.constant dense<0.000000e+00> : vector<8xf32>
    %175 = vector.multi_reduction <add>, %174, %cst_79 [1] : vector<8x32xf32> to vector<8xf32>
    %176 = vector.shape_cast %175 : vector<8xf32> to vector<8x1xf32>
    %cst_80 = arith.constant 3.200000e+01 : f32
    %177 = vector.broadcast %cst_80 : f32 to vector<8x1xf32>
    %178 = arith.divf %176, %177 : vector<8x1xf32>
    %179 = vector.broadcast %169 : vector<8x1xf32> to vector<8x32xf32>
    %180 = arith.subf %165, %179 : vector<8x32xf32>
    %cst_81 = arith.constant 9.99999974E-6 : f32
    %181 = vector.broadcast %cst_81 : f32 to vector<8x1xf32>
    %182 = arith.addf %178, %181 : vector<8x1xf32>
    %183 = math.rsqrt %182 : vector<8x1xf32>
    %184 = vector.broadcast %183 : vector<8x1xf32> to vector<8x32xf32>
    %185 = arith.mulf %180, %184 : vector<8x32xf32>
    %c0_82 = arith.constant 0 : index
    %c0_83 = arith.constant 0 : index
    %186 = vector.load %arg8[%c0_82, %c0_83] : memref<1x32xf32, #tpu.memory_space<vmem>>, vector<1x32xf32>
    %187 = vector.broadcast %186 : vector<1x32xf32> to vector<8x32xf32>
    %188 = arith.mulf %185, %187 : vector<8x32xf32>
    %c0_84 = arith.constant 0 : index
    %c0_85 = arith.constant 0 : index
    %189 = vector.load %arg9[%c0_84, %c0_85] : memref<1x32xf32, #tpu.memory_space<vmem>>, vector<1x32xf32>
    %190 = vector.broadcast %189 : vector<1x32xf32> to vector<8x32xf32>
    %191 = arith.addf %188, %190 : vector<8x32xf32>
    %192 = arith.truncf %191 : vector<8x32xf32> to vector<8x32xbf16>
    %c0_86 = arith.constant 0 : index
    %c0_87 = arith.constant 0 : index
    %193 = vector.load %arg21[%c0_86, %c0_87] : memref<32x16xbf16, #tpu.memory_space<vmem>>, vector<32x16xbf16>
    %cst_88 = arith.constant dense<0.000000e+00> : vector<8x16xf32>
    %194 = tpu.matmul %192, %193, %cst_88 {dimension_numbers = #tpu.dot_dimension_numbers<[1], [0], [0], [1], [0, 0, 1, 1], [], []>} : vector<8x32xbf16>, vector<32x16xbf16>, vector<8x16xf32> -> vector<8x16xf32>
    %c0_89 = arith.constant 0 : index
    %c0_90 = arith.constant 0 : index
    %195 = vector.load %arg11[%c0_89, %c0_90] : memref<1x16xf32, #tpu.memory_space<vmem>>, vector<1x16xf32>
    %196 = vector.broadcast %195 : vector<1x16xf32> to vector<8x16xf32>
    %197 = arith.addf %194, %196 : vector<8x16xf32>
    %cst_91 = arith.constant 0.000000e+00 : f32
    %198 = vector.broadcast %cst_91 : f32 to vector<8x16xf32>
    %199 = arith.maximumf %197, %198 : vector<8x16xf32>
    %c0_92 = arith.constant 0 : index
    %c0_93 = arith.constant 0 : index
    %200 = vector.load %arg12[%c0_92, %c0_93] : memref<1x16xf32, #tpu.memory_space<vmem>>, vector<1x16xf32>
    %201 = vector.broadcast %200 : vector<1x16xf32> to vector<8x16xf32>
    %202 = arith.mulf %199, %201 : vector<8x16xf32>
    %cst_94 = arith.constant dense<0.000000e+00> : vector<8xf32>
    %203 = vector.multi_reduction <add>, %202, %cst_94 [1] : vector<8x16xf32> to vector<8xf32>
    %204 = vector.shape_cast %203 : vector<8xf32> to vector<8x1xf32>
    %c0_95 = arith.constant 0 : index
    %c0_96 = arith.constant 0 : index
    %205 = vector.load %arg13[%c0_95, %c0_96] : memref<1x1xf32, #tpu.memory_space<vmem>>, vector<1x1xf32>
    %206 = vector.broadcast %205 : vector<1x1xf32> to vector<8x1xf32>
    %207 = arith.addf %204, %206 : vector<8x1xf32>
    %208 = arith.negf %207 : vector<8x1xf32>
    %209 = math.exp %208 : vector<8x1xf32>
    %cst_97 = arith.constant 1.000000e+00 : f32
    %210 = vector.broadcast %cst_97 : f32 to vector<8x1xf32>
    %211 = arith.addf %210, %209 : vector<8x1xf32>
    %212 = arith.divf %210, %211 : vector<8x1xf32>
    %213 = vector.broadcast %212 : vector<8x1xf32> to vector<8x32xf32>
    %214 = arith.mulf %191, %213 : vector<8x32xf32>
    %c0_98 = arith.constant 0 : index
    %c0_99 = arith.constant 0 : index
    %c0_100 = arith.constant 0 : index
    %215 = vector.load %arg14[%c0_98, %c0_99, %c0_100] : memref<1x8x32xf32, #tpu.memory_space<vmem>>, vector<1x8x32xf32>
    %216 = vector.shape_cast %215 : vector<1x8x32xf32> to vector<8x32xf32>
    %217 = vector.shape_cast %214 : vector<8x32xf32> to vector<1x8x32xf32>
    tpu.vector_store %arg14[%c0_98, %c0_99, %c0_100], %217 {strides = array<i32>} : memref<1x8x32xf32, #tpu.memory_space<vmem>>, vector<1x8x32xf32>,
    return
  }
  func.func @transform_0(%arg0: i32, %arg1: i32) -> (i32, i32, i32) {
    %c0_i32 = arith.constant 0 : i32
    %c0_i32_0 = arith.constant 0 : i32
    return %arg0, %arg1, %c0_i32 : i32, i32, i32
  }
  func.func @transform_1(%arg0: i32, %arg1: i32) -> (i32, i32, i32) {
    %c0_i32 = arith.constant 0 : i32
    %c0_i32_0 = arith.constant 0 : i32
    %c0_i32_1 = arith.constant 0 : i32
    return %arg0, %c0_i32, %c0_i32_0 : i32, i32, i32
  }
  func.func @transform_3(%arg0: i32, %arg1: i32) -> (i32, i32) {
    %c0_i32 = arith.constant 0 : i32
    %c0_i32_0 = arith.constant 0 : i32
    %c0_i32_1 = arith.constant 0 : i32
    return %c0_i32, %c0_i32_0 : i32, i32
  }
  func.func @transform_5(%arg0: i32, %arg1: i32) -> (i32, i32) {
    %c0_i32 = arith.constant 0 : i32
    %c0_i32_0 = arith.constant 0 : i32
    %c0_i32_1 = arith.constant 0 : i32
    return %c0_i32, %c0_i32_0 : i32, i32
  }
  func.func @transform_6(%arg0: i32, %arg1: i32) -> (i32, i32) {
    %c0_i32 = arith.constant 0 : i32
    %c0_i32_0 = arith.constant 0 : i32
    %c0_i32_1 = arith.constant 0 : i32
    return %c0_i32, %c0_i32_0 : i32, i32
  }
  func.func @transform_7(%arg0: i32, %arg1: i32) -> (i32, i32) {
    %c0_i32 = arith.constant 0 : i32
    %c0_i32_0 = arith.constant 0 : i32
    %c0_i32_1 = arith.constant 0 : i32
    return %c0_i32, %c0_i32_0 : i32, i32
  }
  func.func @transform_9(%arg0: i32, %arg1: i32) -> (i32, i32) {
    %c0_i32 = arith.constant 0 : i32
    %c0_i32_0 = arith.constant 0 : i32
    %c0_i32_1 = arith.constant 0 : i32
    return %c0_i32, %c0_i32_0 : i32, i32
  }
  func.func @transform_10(%arg0: i32, %arg1: i32) -> (i32, i32) {
    %c0_i32 = arith.constant 0 : i32
    %c0_i32_0 = arith.constant 0 : i32
    %c0_i32_1 = arith.constant 0 : i32
    return %c0_i32, %c0_i32_0 : i32, i32
  }
  func.func @transform_11(%arg0: i32, %arg1: i32) -> (i32, i32) {
    %c0_i32 = arith.constant 0 : i32
    %c0_i32_0 = arith.constant 0 : i32
    %c0_i32_1 = arith.constant 0 : i32
    return %c0_i32, %c0_i32_0 : i32, i32
  }
  func.func @transform_12(%arg0: i32, %arg1: i32) -> (i32, i32, i32) {
    %c0_i32 = arith.constant 0 : i32
    %c0_i32_0 = arith.constant 0 : i32
    return %arg0, %arg1, %c0_i32 : i32, i32, i32
  }
  func.func @transform_13(%arg0: i32, %arg1: i32) -> (i32, i32, i32) {
    %c0_i32 = arith.constant 0 : i32
    %c0_i32_0 = arith.constant 0 : i32
    return %arg0, %arg1, %c0_i32 : i32, i32, i32
  }
}

</mosaic_0001>

<llo_original>
// kernel: tpu_custom_call.1
$region0: #{tpu_custom_call.1}
  #allocation0 [shape = 'u32[]', space=smem, size = 0x4, offset = 0x4, fixed_abs, tag = 'smem constant byte address 0x4 - core index']
  #allocation1 [shape = 'u32[144,128]{1,0:T(1,128)}', space=vmem, size = 0x12000, scoped, tag = 'internal scratch']
  #allocation2 [shape = 'bf16[8,32]{1,0:T(8,128)(2,1)}', space=vmem, size = 0x800, scoped, tag = 'scratch operand']
  #allocation3 [shape = 'bf16[32,8]{1,0:T(8,128)(2,1)}', space=vmem, size = 0x2000, scoped, tag = 'scratch operand']
  #allocation4 [shape = 'bf16[8,32]{1,0:T(8,128)(2,1)}', space=vmem, size = 0x800, scoped, tag = 'scratch operand']
  #allocation5 [shape = 'bf16[32,96]{1,0:T(8,128)(2,1)}', space=vmem, size = 0x2000, scoped, tag = 'scratch operand']
  #allocation6 [shape = 'bf16[32,32]{1,0:T(8,128)(2,1)}', space=vmem, size = 0x2000, scoped, tag = 'scratch operand']
  #allocation7 [shape = 'bf16[32,16]{1,0:T(8,128)(2,1)}', space=vmem, size = 0x2000, scoped, tag = 'scratch operand']
  #allocation8 [shape = 's32[3]{0}', space=sflag, size = 0xc, scoped, tag = 'scratch operand']
  #allocation9 [shape = 'f32[1,1]{1,0:T(1,128)S(1)}', space=vmem, size = 0x200, scoped, tag = 'scoped memory for tpu_custom_call.1']
  #allocation22 [shape = 's32[]', space=sflag, size = 0x4, offset = 0, fixed_abs, tag = 'sflag constant byte address 0x0 - dummy sync flag']
  #allocation23 [shape = 's32[]', space=sflag, size = 0x4, offset = 0, fixed_abs, tag = 'sflag constant byte address 0x0 - dummy sync flag']
  #allocation24 [shape = 'u32[]', space=smem, size = 0x4, offset = 0x44, fixed_abs, tag = 'smem constant byte address 0x44 - assertion arg 0']
  #allocation25 [shape = 'u32[]', space=smem, size = 0x4, offset = 0x48, fixed_abs, tag = 'smem constant byte address 0x48 - assertion arg 1']
  #allocation26 [shape = 's32[]', space=sflag, size = 0x4, offset = 0, fixed_abs, tag = 'sflag constant byte address 0x0 - dummy sync flag']
  #allocation27 [shape = 's32[]', space=sflag, size = 0x4, offset = 0, fixed_abs, tag = 'sflag constant byte address 0x0 - dummy sync flag']
  %s0 = inlined_call_operand.vmem [shape: f32[2,8,32], index: 0, kind: input, shape index: {}]
  %s1 = inlined_call_operand.hbm [shape: bf16[2,8,32], index: 1, kind: input, shape index: {}]
  %s2 = inlined_call_operand.hbm [shape: bf16[32,96], index: 2, kind: input, shape index: {}]
  %s3 = inlined_call_operand.hbm [shape: f32[1,96], index: 3, kind: input, shape index: {}]
  %s4 = inlined_call_operand.vmem [shape: bf16[32,32], index: 4, kind: input, shape index: {}]
  %s5 = inlined_call_operand.hbm [shape: f32[1,32], index: 5, kind: input, shape index: {}]
  %s6 = inlined_call_operand.hbm [shape: f32[1,32], index: 6, kind: input, shape index: {}]
  %s7 = inlined_call_operand.hbm [shape: f32[1,32], index: 7, kind: input, shape index: {}]
  %s8 = inlined_call_operand.vmem [shape: bf16[32,16], index: 8, kind: input, shape index: {}]
  %s9 = inlined_call_operand.vmem [shape: f32[1,16], index: 9, kind: input, shape index: {}]
  %s10 = inlined_call_operand.vmem [shape: f32[1,16], index: 10, kind: input, shape index: {}]
  %s11 = inlined_call_operand.<no memory space> [shape: f32[1,1], index: 11, kind: input, shape index: {}]
  %s12 = inlined_call_operand.hbm [shape: f32[2,8,32], index: 12, kind: output, shape index: {0}]
  %s13 = inlined_call_operand.hbm [shape: bf16[2,8,8], index: 13, kind: output, shape index: {1}]
  %14 = xla_tuple %s12, %s13
  %s15 = sld [smem:[#allocation0]]
  $region173: #{tpu_custom_call.1} parent=0
    _
  %s17 = ssub.s32 1, %s15
  %s18 = scalar_select 0, %s17, %s15
  %v19 = vstv %s11
  %20 = vst [vmem:[#allocation9] sm:$0x1] %v19
  $region1: #{tpu_custom_call.1} parent=0
    #allocation10 [shape = 'u8[4096]{0}', space=vmem, size = 0x1000, scoped, tag = 'input window, operand 1']
    #allocation11 [shape = 's32[2]{0}', space=sflag, size = 0x8, scoped, tag = 'scoped memory for tpu_custom_call.1']
    #allocation12 [shape = 's32[2]{0}', space=sflag, size = 0x8, scoped, tag = 'scoped memory for tpu_custom_call.1']
    #allocation13 [shape = 'u8[512]{0}', space=vmem, size = 0x400, scoped, tag = 'input window, operand 3, single buffered']
    #allocation14 [shape = 's32[1]{0}', space=sflag, size = 0x4, scoped, tag = 'scoped memory for tpu_custom_call.1']
    #allocation15 [shape = 'u8[512]{0}', space=vmem, size = 0x400, scoped, tag = 'input window, operand 5, single buffered']
    #allocation16 [shape = 'u8[512]{0}', space=vmem, size = 0x400, scoped, tag = 'input window, operand 6, single buffered']
    #allocation17 [shape = 's32[1]{0}', space=sflag, size = 0x4, scoped, tag = 'scoped memory for tpu_custom_call.1']
    #allocation18 [shape = 'u8[512]{0}', space=vmem, size = 0x400, scoped, tag = 'input window, operand 7, single buffered']
    #allocation19 [shape = 'u8[8192]{0}', space=vmem, size = 0x2000, scoped, tag = 'output window, operand 0']
    #allocation20 [shape = 'u8[4096]{0}', space=vmem, size = 0x1000, scoped, tag = 'output window, operand 1']
    #allocation21 [shape = 's32[2]{0}', space=sflag, size = 0x8, scoped, tag = 'scoped memory for tpu_custom_call.1']
    %21 = vsyncpa [#allocation11], 0
    %s22 = scalar_lea.sflag [#allocation11], 1
    %23 = vsyncpa %s22, 0
    %24 = vsyncpa [#allocation14], 0
    %25 = vsyncpa [#allocation17], 0
    %26 = vsyncpa [#allocation12], 0
    %s27 = scalar_lea.sflag [#allocation12], 1
    %28 = vsyncpa %s27, 0
    %29 = vsyncpa [#allocation21], 0
    %s30 = scalar_lea.sflag [#allocation21], 1
    %31 = vsyncpa %s30, 0
    loop: start=0, step=1, limit=4
    $region2: #{tpu_custom_call.1} parent=1 // loop_pre_header
      _
    $region3: #{tpu_custom_call.1} parent=1 // loop_header
      %s33 = sphi 0, %s37
      %p34 = scmp.ge.s32.totalorder %s33, 4
      %s40 = sphi 0, %s52
      %s41 = sphi 0, %s48
      %s42 = sphi 0, %s40
      %s43 = sphi 0, %s41
      %s44 = sphi 0, %s42
      %s45 = sphi 0, %s43
      %s57 = sphi 0, %s59
      %s60 = sphi 0, %s57
      %s61 = sphi 0, %s60
      %s77 = sphi 0, %s61
      %s83 = sphi 0, %s85
      %s86 = sphi 0, %s83
      %s87 = sphi 0, %s86
      %s103 = sphi 0, %s87
      %s107 = sphi 0, %s107
      %s109 = sphi 0, %s107
      %s110 = sphi 0, %s109
      %s124 = sphi 0, %s110
      %s128 = sphi 0, %s128
      %s130 = sphi 0, %s128
      %s131 = sphi 0, %s130
      %s145 = sphi 0, %s131
      %s149 = sphi 0, %s149
      %s151 = sphi 0, %s149
      %s152 = sphi 0, %s151
      %s166 = sphi 0, %s152
      %s170 = sphi 0, %s170
      %s172 = sphi 0, %s170
      %s173 = sphi 0, %s172
      %s187 = sphi 0, %s173
      %s191 = sphi 0, %s191
      %s193 = sphi 0, %s191
      %s194 = sphi 0, %s193
      %s208 = sphi 0, %s194
      %s212 = sphi 0, %s212
      %s214 = sphi 0, %s212
      %s215 = sphi 0, %s214
      %s229 = sphi 0, %s215
      %s233 = sphi 0, %s233
      %s235 = sphi 0, %s233
      %s236 = sphi 0, %s235
      %s250 = sphi 0, %s236
      %s258 = sphi 0, %s260
      %s261 = sphi 0, %s258
      %s262 = sphi 0, %s261
      %s278 = sphi 0, %s262
      %s286 = sphi 0, %s288
      %s289 = sphi 0, %s286
      %s290 = sphi 0, %s289
      %s306 = sphi 0, %s290
    $region4: #{tpu_custom_call.1} parent=1 // loop_header_branch
      %36 = sbr.rel (%p34) target = $region8
    $region5: #{tpu_custom_call.1} parent=1 // loop_body
      %s38 = ssub.s32 %s33, 1
      %s39 = ssub.s32 %s33, 2
      %s46 = sadd.s32 1, %s41
      %p47 = scmp.ge.s32.totalorder %s46, 1
      %s48 = scalar_select %p47, 0, %s46
      %s49 = sadd.s32 1, %s40
      %s50 = scalar_select %p47, %s49, %s40
      %p51 = scmp.ge.s32.totalorder %s50, 2
      %s52 = scalar_select %p51, 0, %s50
      %s53 = ssub.s32 %s40, %s52
      %s54 = ssub.s32 %s41, %s48
      %s55 = sor.u32 %s53, %s54
      %p56 = scmp.eq.s32.totalorder %s55, 0
      %s58 = sadd.s32 %s57, 1
      %s59 = scalar_select %p56, %s57, %s58
      %p62 = pneg %p56
      %p63 = scmp.eq.s32.totalorder %s33, 1
      %p64 = por %p62, %p63
      %p65 = scmp.ne.s32.totalorder %s57, %s60
      %p66 = scmp.eq.s32.totalorder %s33, 0
      %p67 = por %p65, %p66
      %p68 = scmp.ne.s32.totalorder %s57, %s60
      %p69 = scmp.eq.s32.totalorder %s38, 1
      %p70 = por %p68, %p69
      %p71 = scmp.ne.s32.totalorder %s60, %s61
      %p72 = scmp.eq.s32.totalorder %s38, 0
      %p73 = por %p71, %p72
      %p74 = scmp.ne.s32.totalorder %s60, %s61
      %p75 = scmp.eq.s32.totalorder %s39, 1
      %p76 = por %p74, %p75
      %p78 = scmp.ne.s32.totalorder %s61, %s77
      %p79 = scmp.eq.s32.totalorder %s39, 0
      %p80 = por %p78, %p79
      %s81 = ssub.s32 %s40, %s52
      %p82 = scmp.eq.s32.totalorder %s81, 0
      %s84 = sadd.s32 %s83, 1
      %s85 = scalar_select %p82, %s83, %s84
      %p88 = pneg %p82
      %p89 = scmp.eq.s32.totalorder %s33, 1
      %p90 = por %p88, %p89
      %p91 = scmp.ne.s32.totalorder %s83, %s86
      %p92 = scmp.eq.s32.totalorder %s33, 0
      %p93 = por %p91, %p92
      %p94 = scmp.ne.s32.totalorder %s83, %s86
      %p95 = scmp.eq.s32.totalorder %s38, 1
      %p96 = por %p94, %p95
      %p97 = scmp.ne.s32.totalorder %s86, %s87
      %p98 = scmp.eq.s32.totalorder %s38, 0
      %p99 = por %p97, %p98
      %p100 = scmp.ne.s32.totalorder %s86, %s87
      %p101 = scmp.eq.s32.totalorder %s39, 1
      %p102 = por %p100, %p101
      %p104 = scmp.ne.s32.totalorder %s87, %s103
      %p105 = scmp.eq.s32.totalorder %s39, 0
      %p106 = por %p104, %p105
      %s108 = sadd.s32 %s107, 1
      %p111 = scmp.eq.s32.totalorder %s33, 1
      %p112 = scmp.ne.s32.totalorder %s107, %s109
      %p113 = scmp.eq.s32.totalorder %s33, 0
      %p114 = por %p112, %p113
      %p115 = scmp.ne.s32.totalorder %s107, %s109
      %p116 = scmp.eq.s32.totalorder %s38, 1
      %p117 = por %p115, %p116
      %p118 = scmp.ne.s32.totalorder %s109, %s110
      %p119 = scmp.eq.s32.totalorder %s38, 0
      %p120 = por %p118, %p119
      %p121 = scmp.ne.s32.totalorder %s109, %s110
      %p122 = scmp.eq.s32.totalorder %s39, 1
      %p123 = por %p121, %p122
      %p125 = scmp.ne.s32.totalorder %s110, %s124
      %p126 = scmp.eq.s32.totalorder %s39, 0
      %p127 = por %p125, %p126
      %s129 = sadd.s32 %s128, 1
      %p132 = scmp.eq.s32.totalorder %s33, 1
      %p133 = scmp.ne.s32.totalorder %s128, %s130
      %p134 = scmp.eq.s32.totalorder %s33, 0
      %p135 = por %p133, %p134
      %p136 = scmp.ne.s32.totalorder %s128, %s130
      %p137 = scmp.eq.s32.totalorder %s38, 1
      %p138 = por %p136, %p137
      %p139 = scmp.ne.s32.totalorder %s130, %s131
      %p140 = scmp.eq.s32.totalorder %s38, 0
      %p141 = por %p139, %p140
      %p142 = scmp.ne.s32.totalorder %s130, %s131
      %p143 = scmp.eq.s32.totalorder %s39, 1
      %p144 = por %p142, %p143
      %p146 = scmp.ne.s32.totalorder %s131, %s145
      %p147 = scmp.eq.s32.totalorder %s39, 0
      %p148 = por %p146, %p147
      %s150 = sadd.s32 %s149, 1
      %p153 = scmp.eq.s32.totalorder %s33, 1
      %p154 = scmp.ne.s32.totalorder %s149, %s151
      %p155 = scmp.eq.s32.totalorder %s33, 0
      %p156 = por %p154, %p155
      %p157 = scmp.ne.s32.totalorder %s149, %s151
      %p158 = scmp.eq.s32.totalorder %s38, 1
      %p159 = por %p157, %p158
      %p160 = scmp.ne.s32.totalorder %s151, %s152
      %p161 = scmp.eq.s32.totalorder %s38, 0
      %p162 = por %p160, %p161
      %p163 = scmp.ne.s32.totalorder %s151, %s152
      %p164 = scmp.eq.s32.totalorder %s39, 1
      %p165 = por %p163, %p164
      %p167 = scmp.ne.s32.totalorder %s152, %s166
      %p168 = scmp.eq.s32.totalorder %s39, 0
      %p169 = por %p167, %p168
      %s171 = sadd.s32 %s170, 1
      %p174 = scmp.eq.s32.totalorder %s33, 1
      %p175 = scmp.ne.s32.totalorder %s170, %s172
      %p176 = scmp.eq.s32.totalorder %s33, 0
      %p177 = por %p175, %p176
      %p178 = scmp.ne.s32.totalorder %s170, %s172
      %p179 = scmp.eq.s32.totalorder %s38, 1
      %p180 = por %p178, %p179
      %p181 = scmp.ne.s32.totalorder %s172, %s173
      %p182 = scmp.eq.s32.totalorder %s38, 0
      %p183 = por %p181, %p182
      %p184 = scmp.ne.s32.totalorder %s172, %s173
      %p185 = scmp.eq.s32.totalorder %s39, 1
      %p186 = por %p184, %p185
      %p188 = scmp.ne.s32.totalorder %s173, %s187
      %p189 = scmp.eq.s32.totalorder %s39, 0
      %p190 = por %p188, %p189
      %s192 = sadd.s32 %s191, 1
      %p195 = scmp.eq.s32.totalorder %s33, 1
      %p196 = scmp.ne.s32.totalorder %s191, %s193
      %p197 = scmp.eq.s32.totalorder %s33, 0
      %p198 = por %p196, %p197
      %p199 = scmp.ne.s32.totalorder %s191, %s193
      %p200 = scmp.eq.s32.totalorder %s38, 1
      %p201 = por %p199, %p200
      %p202 = scmp.ne.s32.totalorder %s193, %s194
      %p203 = scmp.eq.s32.totalorder %s38, 0
      %p204 = por %p202, %p203
      %p205 = scmp.ne.s32.totalorder %s193, %s194
      %p206 = scmp.eq.s32.totalorder %s39, 1
      %p207 = por %p205, %p206
      %p209 = scmp.ne.s32.totalorder %s194, %s208
      %p210 = scmp.eq.s32.totalorder %s39, 0
      %p211 = por %p209, %p210
      %s213 = sadd.s32 %s212, 1
      %p216 = scmp.eq.s32.totalorder %s33, 1
      %p217 = scmp.ne.s32.totalorder %s212, %s214
      %p218 = scmp.eq.s32.totalorder %s33, 0
      %p219 = por %p217, %p218
      %p220 = scmp.ne.s32.totalorder %s212, %s214
      %p221 = scmp.eq.s32.totalorder %s38, 1
      %p222 = por %p220, %p221
      %p223 = scmp.ne.s32.totalorder %s214, %s215
      %p224 = scmp.eq.s32.totalorder %s38, 0
      %p225 = por %p223, %p224
      %p226 = scmp.ne.s32.totalorder %s214, %s215
      %p227 = scmp.eq.s32.totalorder %s39, 1
      %p228 = por %p226, %p227
      %p230 = scmp.ne.s32.totalorder %s215, %s229
      %p231 = scmp.eq.s32.totalorder %s39, 0
      %p232 = por %p230, %p231
      %s234 = sadd.s32 %s233, 1
      %p237 = scmp.eq.s32.totalorder %s33, 1
      %p238 = scmp.ne.s32.totalorder %s233, %s235
      %p239 = scmp.eq.s32.totalorder %s33, 0
      %p240 = por %p238, %p239
      %p241 = scmp.ne.s32.totalorder %s233, %s235
      %p242 = scmp.eq.s32.totalorder %s38, 1
      %p243 = por %p241, %p242
      %p244 = scmp.ne.s32.totalorder %s235, %s236
      %p245 = scmp.eq.s32.totalorder %s38, 0
      %p246 = por %p244, %p245
      %p247 = scmp.ne.s32.totalorder %s235, %s236
      %p248 = scmp.eq.s32.totalorder %s39, 1
      %p249 = por %p247, %p248
      %p251 = scmp.ne.s32.totalorder %s236, %s250
      %p252 = scmp.eq.s32.totalorder %s39, 0
      %p253 = por %p251, %p252
      %s254 = ssub.s32 %s40, %s52
      %s255 = ssub.s32 %s41, %s48
      %s256 = sor.u32 %s254, %s255
      %p257 = scmp.eq.s32.totalorder %s256, 0
      %s259 = sadd.s32 %s258, 1
      %s260 = scalar_select %p257, %s258, %s259
      %p263 = pneg %p257
      %p264 = scmp.eq.s32.totalorder %s33, 1
      %p265 = por %p263, %p264
      %p266 = scmp.ne.s32.totalorder %s258, %s261
      %p267 = scmp.eq.s32.totalorder %s33, 0
      %p268 = por %p266, %p267
      %p269 = scmp.ne.s32.totalorder %s258, %s261
      %p270 = scmp.eq.s32.totalorder %s38, 1
      %p271 = por %p269, %p270
      %p272 = scmp.ne.s32.totalorder %s261, %s262
      %p273 = scmp.eq.s32.totalorder %s38, 0
      %p274 = por %p272, %p273
      %p275 = scmp.ne.s32.totalorder %s261, %s262
      %p276 = scmp.eq.s32.totalorder %s39, 1
      %p277 = por %p275, %p276
      %p279 = scmp.ne.s32.totalorder %s262, %s278
      %p280 = scmp.eq.s32.totalorder %s39, 0
      %p281 = por %p279, %p280
      %s282 = ssub.s32 %s40, %s52
      %s283 = ssub.s32 %s41, %s48
      %s284 = sor.u32 %s282, %s283
      %p285 = scmp.eq.s32.totalorder %s284, 0
      %s287 = sadd.s32 %s286, 1
      %s288 = scalar_select %p285, %s286, %s287
      %p291 = pneg %p285
      %p292 = scmp.eq.s32.totalorder %s33, 1
      %p293 = por %p291, %p292
      %p294 = scmp.ne.s32.totalorder %s286, %s289
      %p295 = scmp.eq.s32.totalorder %s33, 0
      %p296 = por %p294, %p295
      %p297 = scmp.ne.s32.totalorder %s286, %s289
      %p298 = scmp.eq.s32.totalorder %s38, 1
      %p299 = por %p297, %p298
      %p300 = scmp.ne.s32.totalorder %s289, %s290
      %p301 = scmp.eq.s32.totalorder %s38, 0
      %p302 = por %p300, %p301
      %p303 = scmp.ne.s32.totalorder %s289, %s290
      %p304 = scmp.eq.s32.totalorder %s39, 1
      %p305 = por %p303, %p304
      %p307 = scmp.ne.s32.totalorder %s290, %s306
      %p308 = scmp.eq.s32.totalorder %s39, 0
      %p309 = por %p307, %p308
      %p310 = scmp.le.s32.totalorder 1, %s33
      %p311 = scmp.lt.s32.totalorder %s33, 3
      %p312 = pnand %p310, %p311
      %p313 = pneg %p312
      // Predicated region
      $region9: #{tpu_custom_call.1} parent=5 // pred_check
        _
      $region10: #{tpu_custom_call.1} parent=5 // pred_check_branch
        %315 = sbr.rel (%p312) target = $region12
      $region11: #{tpu_custom_call.1} parent=5 // pred_region
        %s316 = ssub.s32 %s33, 1
        // Predicated region
        $region13: #{tpu_custom_call.1} parent=11 // pred_check
          %p317 = pneg %p120
        $region14: #{tpu_custom_call.1} parent=11 // pred_check_branch
          %319 = sbr.rel (%p317) target = $region16
        $region15: #{tpu_custom_call.1} parent=11 // pred_region
          %s321 = ssub.s32 16, 16
          %322 = vsyncadd [#allocation14], %s321
          %s324 = sshll.u32 [#allocation13], 4
          %s325 = int_to_ptr.vmem [resolvable:$true] %s324
          %327 = dma.hbm_to_vmem [thread:$0]  %s3, 16, %s325, [#allocation14]
        $region16: #{tpu_custom_call.1} parent=11 // pred_fallthru
          _
        // Predicated region
        $region17: #{tpu_custom_call.1} parent=11 // pred_check
          %p328 = pneg %p141
        $region18: #{tpu_custom_call.1} parent=11 // pred_check_branch
          %330 = sbr.rel (%p328) target = $region20
        $region19: #{tpu_custom_call.1} parent=11 // pred_region
          %s332 = ssub.s32 16, 16
          %333 = vsyncadd [#allocation14], %s332
          %s335 = sshll.u32 [#allocation15], 4
          %s336 = int_to_ptr.vmem [resolvable:$true] %s335
          %338 = dma.hbm_to_vmem [thread:$0]  %s5, 16, %s336, [#allocation14]
        $region20: #{tpu_custom_call.1} parent=11 // pred_fallthru
          _
        // Predicated region
        $region21: #{tpu_custom_call.1} parent=11 // pred_check
          %p339 = pneg %p162
        $region22: #{tpu_custom_call.1} parent=11 // pred_check_branch
          %341 = sbr.rel (%p339) target = $region24
        $region23: #{tpu_custom_call.1} parent=11 // pred_region
          %s343 = ssub.s32 16, 16
          %344 = vsyncadd [#allocation17], %s343
          %s346 = sshll.u32 [#allocation16], 4
          %s347 = int_to_ptr.vmem [resolvable:$true] %s346
          %349 = dma.hbm_to_vmem [thread:$0]  %s6, 16, %s347, [#allocation17]
        $region24: #{tpu_custom_call.1} parent=11 // pred_fallthru
          _
        // Predicated region
        $region25: #{tpu_custom_call.1} parent=11 // pred_check
          %p350 = pneg %p183
        $region26: #{tpu_custom_call.1} parent=11 // pred_check_branch
          %352 = sbr.rel (%p350) target = $region28
        $region27: #{tpu_custom_call.1} parent=11 // pred_region
          %s354 = ssub.s32 16, 16
          %355 = vsyncadd [#allocation17], %s354
          %s357 = sshll.u32 [#allocation18], 4
          %s358 = int_to_ptr.vmem [resolvable:$true] %s357
          %360 = dma.hbm_to_vmem [thread:$0]  %s7, 16, %s358, [#allocation17]
        $region28: #{tpu_custom_call.1} parent=11 // pred_fallthru
          _
        // Predicated region
        $region29: #{tpu_custom_call.1} parent=11 // pred_check
          %p361 = pneg %p204
        $region30: #{tpu_custom_call.1} parent=11 // pred_check_branch
          %363 = sbr.rel (%p361) target = $region32
        $region31: #{tpu_custom_call.1} parent=11 // pred_region
          _
        $region32: #{tpu_custom_call.1} parent=11 // pred_fallthru
          _
        // Predicated region
        $region33: #{tpu_custom_call.1} parent=11 // pred_check
          %p364 = pneg %p225
        $region34: #{tpu_custom_call.1} parent=11 // pred_check_branch
          %366 = sbr.rel (%p364) target = $region36
        $region35: #{tpu_custom_call.1} parent=11 // pred_region
          _
        $region36: #{tpu_custom_call.1} parent=11 // pred_fallthru
          _
        // Predicated region
        $region37: #{tpu_custom_call.1} parent=11 // pred_check
          %p367 = pneg %p246
        $region38: #{tpu_custom_call.1} parent=11 // pred_check_branch
          %369 = sbr.rel (%p367) target = $region40
        $region39: #{tpu_custom_call.1} parent=11 // pred_region
          _
        $region40: #{tpu_custom_call.1} parent=11 // pred_fallthru
          _
      $region12: #{tpu_custom_call.1} parent=5 // pred_fallthru
        _
      %p370 = scmp.lt.s32.totalorder %s33, 2
      // Predicated region
      $region41: #{tpu_custom_call.1} parent=5 // pred_check
        %p371 = pneg %p370
      $region42: #{tpu_custom_call.1} parent=5 // pred_check_branch
        %373 = sbr.rel (%p371) target = $region44
      $region43: #{tpu_custom_call.1} parent=5 // pred_region
        // Predicated region
        $region45: #{tpu_custom_call.1} parent=43 // pred_check
          %p374 = pneg %p67
        $region46: #{tpu_custom_call.1} parent=43 // pred_check_branch
          %376 = sbr.rel (%p374) target = $region48
        $region47: #{tpu_custom_call.1} parent=43 // pred_region
          %p377 = scmp.lt.s32.totalorder %s40, 1
          %s378 = scalar_select %p377, %s40, 1
          %p379 = scmp.lt.s32.totalorder %s41, 0
          %s380 = scalar_select %p379, %s41, 0
          %s381 = sadd.s32 %s380, %s378
          %s382 = smul.addr %s381, 8
          %s383 = scalar_lea.vmem %s0, %s382
        $region48: #{tpu_custom_call.1} parent=43 // pred_fallthru
          _
        // Predicated region
        $region49: #{tpu_custom_call.1} parent=43 // pred_check
          %p384 = pneg %p93
        $region50: #{tpu_custom_call.1} parent=43 // pred_check_branch
          %386 = sbr.rel (%p384) target = $region52
        $region51: #{tpu_custom_call.1} parent=43 // pred_region
          %s387 = sand.u32 %s83, 1
          %s388 = scalar_lea.sflag [#allocation11], %s387
          %s389 = sand.u32 %s83, 1
          %s390 = smul.addr %s389, 4
          %s391 = scalar_lea.vmem [#allocation10], %s390
          %s393 = ssub.s32 64, 64
          %394 = vsyncadd %s388, %s393
          %s395 = smul.addr %s40, 64
          %s396 = scalar_lea.hbm %s1, %s395
          %s398 = sshll.u32 %s391, 4
          %s399 = int_to_ptr.vmem [resolvable:$true] %s398
          %401 = dma.hbm_to_vmem [thread:$0]  %s396, 64, %s399, %s388
        $region52: #{tpu_custom_call.1} parent=43 // pred_fallthru
          _
      $region44: #{tpu_custom_call.1} parent=5 // pred_fallthru
        _
      %p402 = scmp.le.s32.totalorder 1, %s33
      %p403 = scmp.lt.s32.totalorder %s33, 3
      %p404 = pnand %p402, %p403
      %p405 = pneg %p404
      // Predicated region
      $region53: #{tpu_custom_call.1} parent=5 // pred_check
        _
      $region54: #{tpu_custom_call.1} parent=5 // pred_check_branch
        %407 = sbr.rel (%p404) target = $region56
      $region55: #{tpu_custom_call.1} parent=5 // pred_region
        %s408 = ssub.s32 %s33, 1
        %s409 = sand.u32 %s86, 1
        %s410 = scalar_lea.sflag [#allocation11], %s409
        %s411 = sand.u32 %s86, 1
        %s412 = smul.addr %s411, 4
        %s413 = scalar_lea.vmem [#allocation10], %s412
        // Predicated region
        $region57: #{tpu_custom_call.1} parent=55 // pred_check
          %p414 = pneg %p99
        $region58: #{tpu_custom_call.1} parent=55 // pred_check_branch
          %416 = sbr.rel (%p414) target = $region60
        $region59: #{tpu_custom_call.1} parent=55 // pred_region
          %417 = dma.done %s410, 64
        $region60: #{tpu_custom_call.1} parent=55 // pred_fallthru
          _
        // Predicated region
        $region61: #{tpu_custom_call.1} parent=55 // pred_check
          %p418 = pneg %p120
        $region62: #{tpu_custom_call.1} parent=55 // pred_check_branch
          %420 = sbr.rel (%p418) target = $region64
        $region63: #{tpu_custom_call.1} parent=55 // pred_region
          %421 = dma.done [#allocation14], 16
        $region64: #{tpu_custom_call.1} parent=55 // pred_fallthru
          _
        // Predicated region
        $region65: #{tpu_custom_call.1} parent=55 // pred_check
          %p422 = pneg %p141
        $region66: #{tpu_custom_call.1} parent=55 // pred_check_branch
          %424 = sbr.rel (%p422) target = $region68
        $region67: #{tpu_custom_call.1} parent=55 // pred_region
          %425 = dma.done [#allocation14], 16
        $region68: #{tpu_custom_call.1} parent=55 // pred_fallthru
          _
        // Predicated region
        $region69: #{tpu_custom_call.1} parent=55 // pred_check
          %p426 = pneg %p162
        $region70: #{tpu_custom_call.1} parent=55 // pred_check_branch
          %428 = sbr.rel (%p426) target = $region72
        $region71: #{tpu_custom_call.1} parent=55 // pred_region
          %429 = dma.done [#allocation17], 16
        $region72: #{tpu_custom_call.1} parent=55 // pred_fallthru
          _
        // Predicated region
        $region73: #{tpu_custom_call.1} parent=55 // pred_check
          %p430 = pneg %p183
        $region74: #{tpu_custom_call.1} parent=55 // pred_check_branch
          %432 = sbr.rel (%p430) target = $region76
        $region75: #{tpu_custom_call.1} parent=55 // pred_region
          %433 = dma.done [#allocation17], 16
        $region76: #{tpu_custom_call.1} parent=55 // pred_fallthru
          _
        %p434 = scmp.lt.s32.totalorder %s42, 1
        %s435 = scalar_select %p434, %s42, 1
        %p436 = scmp.lt.s32.totalorder %s43, 0
        %s437 = scalar_select %p436, %s43, 0
        %s438 = sadd.s32 %s437, %s435
        %s439 = smul.addr %s438, 8
        %s440 = scalar_lea.vmem %s0, %s439
        %p441 = pneg %p73
        %p442 = pneg %p70
        %s443 = sand.u32 %s86, 1
        %s444 = scalar_lea.sflag [#allocation11], %s443
        %s445 = sand.u32 %s86, 1
        %s446 = smul.addr %s445, 4
        %s447 = scalar_lea.vmem [#allocation10], %s446
        %p448 = pneg %p99
        %p449 = pneg %p96
        %p450 = pneg %p120
        %p451 = pneg %p117
        %p452 = pneg %p141
        %p453 = pneg %p138
        %p454 = pneg %p162
        %p455 = pneg %p159
        %p456 = pneg %p183
        %p457 = pneg %p180
        %p458 = pneg %p204
        %p459 = pneg %p201
        %p460 = pneg %p225
        %p461 = pneg %p222
        %p462 = pneg %p246
        %p463 = pneg %p243
        %p464 = pneg %p274
        %p465 = pneg %p271
        %s466 = sand.u32 %s261, 1
        %s467 = scalar_lea.sflag [#allocation12], %s466
        %s468 = sand.u32 %s261, 1
        %s469 = smul.addr %s468, 8
        %s470 = scalar_lea.vmem [#allocation19], %s469
        %p471 = pneg %p302
        %p472 = pneg %p299
        %s473 = sand.u32 %s289, 1
        %s474 = scalar_lea.sflag [#allocation21], %s473
        %s475 = sand.u32 %s289, 1
        %s476 = smul.addr %s475, 4
        %s477 = scalar_lea.vmem [#allocation20], %s476
        %p478 = scmp.lt.s32.totalorder %s42, 1
        %s479 = scalar_select %p478, %s42, 1
        %p480 = scmp.lt.s32.totalorder %s43, 0
        %s481 = scalar_select %p480, %s43, 0
        %s482 = sadd.s32 %s481, %s479
        %s483 = smul.addr %s482, 8
        %s484 = scalar_lea.vmem %s0, %s483
        %p486 = scmp.eq.s32.totalorder %s43, 0
        // Predicated region
        $region77: #{tpu_custom_call.1} parent=55 // pred_check
          %p487 = pneg %p486
        $region78: #{tpu_custom_call.1} parent=55 // pred_check_branch
          %489 = sbr.rel (%p487) target = $region80
        $region79: #{tpu_custom_call.1} parent=55 // pred_region
          // Predicated region
          $region81: #{tpu_custom_call.1} parent=79 // pred_check
            _
          $region82: #{tpu_custom_call.1} parent=79 // pred_check_branch
            %491 = sbr.rel target = $region84
          $region83: #{tpu_custom_call.1} parent=79 // pred_region
            %492 = sst [smem:[#allocation24]] [#allocation23]
            %493 = sst [smem:[#allocation25]] [#allocation22]
          $region84: #{tpu_custom_call.1} parent=79 // pred_fallthru
            _
          %495 = shalt.err (0)
          %s497 = sshll.u32 [#allocation5], 4
          %s498 = int_to_ptr.vmem [resolvable:$true] %s497
          %500 = dma.hbm_to_vmem [thread:$0]  %s2, 256, %s498, [#allocation8]
          %s501 = scalar_lea.sflag [#allocation8], 1
          %p503 = scmp.lt.u32.totalorder 16, 8
          %p504 = pneg %p503
          // Predicated region
          $region85: #{tpu_custom_call.1} parent=79 // pred_check
            _
          $region86: #{tpu_custom_call.1} parent=79 // pred_check_branch
            %506 = sbr.rel (%p503) target = $region88
          $region87: #{tpu_custom_call.1} parent=79 // pred_region
            %s522 = sand.u32 16, 7
            %p523 = scmp.eq.s32.totalorder %s522, 0
            // Predicated region
            $region100: #{tpu_custom_call.1} parent=87 // pred_check
              %p524 = pneg %p523
            $region101: #{tpu_custom_call.1} parent=87 // pred_check_branch
              %526 = sbr.rel (%p524) target = $region103
            $region102: #{tpu_custom_call.1} parent=87 // pred_region
              loop: start=0, step=1, limit=1
              $region104: #{tpu_custom_call.1} parent=102 // loop_pre_header
                _
              $region105: #{tpu_custom_call.1} parent=102 // loop_header
                %s528 = sphi 0, %s532
                %p529 = scmp.ge.s32.totalorder %s528, 1
                %s533 = sphi %s4, %s4
                %s534 = sphi [#allocation6], [#allocation6]
              $region106: #{tpu_custom_call.1} parent=102 // loop_header_branch
                %531 = sbr.rel (%p529) target = $region110
              $region107: #{tpu_custom_call.1} parent=102 // loop_body
                %v535 = vld [vmem:[%s533] sm:$0xff]
                %536 = vst [vmem:[%s534] sm:$0xff] %v535
                %v537 = vld [vmem:[%s533 + $0x8] sm:$0xff]
                %538 = vst [vmem:[%s534 + $0x8] sm:$0xff] %v537
              $region108: #{tpu_custom_call.1} parent=102 // loop_footer
                %s532 = sadd.s32 1, %s528
              $region109: #{tpu_custom_call.1} parent=102 // loop_footer_branch
                %527 = sbr.rel target = $region105
              $region110: #{tpu_custom_call.1} parent=102 // loop_exit
                _
            $region103: #{tpu_custom_call.1} parent=87 // pred_fallthru
              _
            %p539 = pneg %p523
            // Predicated region
            $region111: #{tpu_custom_call.1} parent=87 // pred_check
              _
            $region112: #{tpu_custom_call.1} parent=87 // pred_check_branch
              %541 = sbr.rel (%p523) target = $region114
            $region113: #{tpu_custom_call.1} parent=87 // pred_region
              %s542 = sand.u32 16, 7
            $region114: #{tpu_custom_call.1} parent=87 // pred_fallthru
              _
          $region88: #{tpu_custom_call.1} parent=79 // pred_fallthru
            _
          // Predicated region
          $region89: #{tpu_custom_call.1} parent=79 // pred_check
            %p507 = pneg %p503
          $region90: #{tpu_custom_call.1} parent=79 // pred_check_branch
            %509 = sbr.rel (%p507) target = $region92
          $region91: #{tpu_custom_call.1} parent=79 // pred_region
            %s510 = sshll.u32 1, 16
            %s511 = ssub.s32 %s510, 1
            loop: start=0, step=1, limit=1
            $region93: #{tpu_custom_call.1} parent=91 // loop_pre_header
              _
            $region94: #{tpu_custom_call.1} parent=91 // loop_header
              %s513 = sphi 0, %s517
              %p514 = scmp.ge.s32.totalorder %s513, 1
              %s518 = sphi %s4, %s4
              %s519 = sphi [#allocation6], [#allocation6]
            $region95: #{tpu_custom_call.1} parent=91 // loop_header_branch
              %516 = sbr.rel (%p514) target = $region99
            $region96: #{tpu_custom_call.1} parent=91 // loop_body
              %v520 = vld [vmem:[%s518] sm:%s511]
              %521 = vst [vmem:[%s519] sm:%s511] %v520
            $region97: #{tpu_custom_call.1} parent=91 // loop_footer
              %s517 = sadd.s32 1, %s513
            $region98: #{tpu_custom_call.1} parent=91 // loop_footer_branch
              %512 = sbr.rel target = $region94
            $region99: #{tpu_custom_call.1} parent=91 // loop_exit
              _
          $region92: #{tpu_custom_call.1} parent=79 // pred_fallthru
            _
          // Predicated region
          $region115: #{tpu_custom_call.1} parent=79 // pred_check
            _
          $region116: #{tpu_custom_call.1} parent=79 // pred_check_branch
            %545 = sbr.rel (0) target = $region118
          $region117: #{tpu_custom_call.1} parent=79 // pred_region
            %546 = vsyncadd %s501, 256
          $region118: #{tpu_custom_call.1} parent=79 // pred_fallthru
            _
          %s547 = scalar_lea.sflag [#allocation8], 2
          %p549 = scmp.lt.u32.totalorder 16, 8
          %p550 = pneg %p549
          // Predicated region
          $region119: #{tpu_custom_call.1} parent=79 // pred_check
            _
          $region120: #{tpu_custom_call.1} parent=79 // pred_check_branch
            %552 = sbr.rel (%p549) target = $region122
          $region121: #{tpu_custom_call.1} parent=79 // pred_region
            %s568 = sand.u32 16, 7
            %p569 = scmp.eq.s32.totalorder %s568, 0
            // Predicated region
            $region134: #{tpu_custom_call.1} parent=121 // pred_check
              %p570 = pneg %p569
            $region135: #{tpu_custom_call.1} parent=121 // pred_check_branch
              %572 = sbr.rel (%p570) target = $region137
            $region136: #{tpu_custom_call.1} parent=121 // pred_region
              loop: start=0, step=1, limit=1
              $region138: #{tpu_custom_call.1} parent=136 // loop_pre_header
                _
              $region139: #{tpu_custom_call.1} parent=136 // loop_header
                %s574 = sphi 0, %s578
                %p575 = scmp.ge.s32.totalorder %s574, 1
                %s579 = sphi %s8, %s8
                %s580 = sphi [#allocation7], [#allocation7]
              $region140: #{tpu_custom_call.1} parent=136 // loop_header_branch
                %577 = sbr.rel (%p575) target = $region144
              $region141: #{tpu_custom_call.1} parent=136 // loop_body
                %v581 = vld [vmem:[%s579] sm:$0xff]
                %582 = vst [vmem:[%s580] sm:$0xff] %v581
                %v583 = vld [vmem:[%s579 + $0x8] sm:$0xff]
                %584 = vst [vmem:[%s580 + $0x8] sm:$0xff] %v583
              $region142: #{tpu_custom_call.1} parent=136 // loop_footer
                %s578 = sadd.s32 1, %s574
              $region143: #{tpu_custom_call.1} parent=136 // loop_footer_branch
                %573 = sbr.rel target = $region139
              $region144: #{tpu_custom_call.1} parent=136 // loop_exit
                _
            $region137: #{tpu_custom_call.1} parent=121 // pred_fallthru
              _
            %p585 = pneg %p569
            // Predicated region
            $region145: #{tpu_custom_call.1} parent=121 // pred_check
              _
            $region146: #{tpu_custom_call.1} parent=121 // pred_check_branch
              %587 = sbr.rel (%p569) target = $region148
            $region147: #{tpu_custom_call.1} parent=121 // pred_region
              %s588 = sand.u32 16, 7
            $region148: #{tpu_custom_call.1} parent=121 // pred_fallthru
              _
          $region122: #{tpu_custom_call.1} parent=79 // pred_fallthru
            _
          // Predicated region
          $region123: #{tpu_custom_call.1} parent=79 // pred_check
            %p553 = pneg %p549
          $region124: #{tpu_custom_call.1} parent=79 // pred_check_branch
            %555 = sbr.rel (%p553) target = $region126
          $region125: #{tpu_custom_call.1} parent=79 // pred_region
            %s556 = sshll.u32 1, 16
            %s557 = ssub.s32 %s556, 1
            loop: start=0, step=1, limit=1
            $region127: #{tpu_custom_call.1} parent=125 // loop_pre_header
              _
            $region128: #{tpu_custom_call.1} parent=125 // loop_header
              %s559 = sphi 0, %s563
              %p560 = scmp.ge.s32.totalorder %s559, 1
              %s564 = sphi %s8, %s8
              %s565 = sphi [#allocation7], [#allocation7]
            $region129: #{tpu_custom_call.1} parent=125 // loop_header_branch
              %562 = sbr.rel (%p560) target = $region133
            $region130: #{tpu_custom_call.1} parent=125 // loop_body
              %v566 = vld [vmem:[%s564] sm:%s557]
              %567 = vst [vmem:[%s565] sm:%s557] %v566
            $region131: #{tpu_custom_call.1} parent=125 // loop_footer
              %s563 = sadd.s32 1, %s559
            $region132: #{tpu_custom_call.1} parent=125 // loop_footer_branch
              %558 = sbr.rel target = $region128
            $region133: #{tpu_custom_call.1} parent=125 // loop_exit
              _
          $region126: #{tpu_custom_call.1} parent=79 // pred_fallthru
            _
          // Predicated region
          $region149: #{tpu_custom_call.1} parent=79 // pred_check
            _
          $region150: #{tpu_custom_call.1} parent=79 // pred_check_branch
            %591 = sbr.rel (0) target = $region152
          $region151: #{tpu_custom_call.1} parent=79 // pred_region
            %592 = vsyncadd %s547, 256
          $region152: #{tpu_custom_call.1} parent=79 // pred_fallthru
            _
          %s593 = smul.u32 4, 4
          %s594 = smul.u32 %s593, 1
          %s595 = sshll.u32 %s594, 4
          %596 = dma.done [#allocation8], %s595
          %s597 = sshll.u32 %s594, 4
          %598 = dma.done %s501, %s597
          %s599 = sshll.u32 %s594, 4
          %600 = dma.done %s547, %s599
          %v601 = vld [vmem:[%s413] sm:$0xf]
          %v602 = vld [vmem:[#allocation5] sm:$0xf]
          %v603 = vld [vmem:[#allocation5 + $0x4] sm:$0xf]
          %v604 = vld [vmem:[#allocation5 + $0x8] sm:$0xf]
          %v605 = vld [vmem:[#allocation5 + $0xc] sm:$0xf]
          %v606 = vld [vmem:[#allocation13] sm:$0x1]
          %v608 = vlaneseq
          %v609 = vshrl.u32 %v608, 7
          %v610 = vsub.s32 0, %v609
          %v611 = vrot.slane %v606, %v610
          %v617 = vunpack.c.l.b16 %v602
          %v618 = vunpack.c.l.b16 %v603
          %v619 = vunpack.c.l.b16 %v604
          %v620 = vunpack.c.l.b16 %v605
          %v621 = vpack.c.b16 %v618, %v617
          %v622 = vpack.c.b16 %v620, %v619
          %vm625 = vcmask 261120
          %v627 = vsel %vm625, %v601, 0
          %629 = vmatprep.subr.bf16.mxu0 0
          %630 = vmatpush1.bf16.msra.mxu0 0
          %631 = vmatprep.subr.bf16.mxu0 0
          %632 = vmatpush1.bf16.msra.mxu0 0
          %633 = vmatprep.subr.bf16.mxu0 0
          %634 = vmatpush1.bf16.msra.mxu0 0
          %635 = vmatprep.subr.bf16.mxu0 0
          %636 = vmatpush1.bf16.msra.mxu0 0
          %637 = vmatprep.subr.bf16.mxu0 0
          %638 = vmatpush1.bf16.msra.mxu0 0
          %639 = vmatprep.subr.bf16.mxu0 0
          %640 = vmatpush1.bf16.msra.mxu0 0
          %641 = vmatprep.subr.bf16.mxu0 0
          %642 = vmatpush1.bf16.msra.mxu0 %v622
          %643 = vmatprep.subr.bf16.mxu0 0
          %644 = vmatpush1.bf16.msra.mxu0 %v621
          %645 = vmatprep.subr.bf16.mxu0 0
          %646 = vmatpush2.bf16.msra.mxu0 0
          %647 = vmatprep.subr.bf16.mxu0 0
          %648 = vmatpush2.bf16.msra.mxu0 0
          %649 = vmatprep.subr.bf16.mxu0 0
          %650 = vmatpush2.bf16.msra.mxu0 0
          %651 = vmatprep.subr.bf16.mxu0 0
          %652 = vmatpush2.bf16.msra.mxu0 0
          %653 = vmatprep.subr.bf16.mxu0 0
          %654 = vmatpush2.bf16.msra.mxu0 0
          %655 = vmatprep.subr.bf16.mxu0 0
          %656 = vmatpush2.bf16.msra.mxu0 0
          %657 = vmatprep.subr.bf16.mxu0 0
          %658 = vmatpush2.bf16.msra.mxu0 0
          %659 = vmatprep.subr.bf16.mxu0 0
          %660 = vmatpush2.bf16.msra.mxu0 0
          %661 = vmatprep.mubr.bf16.mxu0 0
          %662 = vmatmul.mubr.bf16.gmra.mxu0 %v627
          %v663 = vpop.f32.mrf.mxu0
          %v664 = vadd.f32 %v611, %v663
          %v665 = vpop.f32.mrf.mxu0
          %v666 = vpop.f32.mrf.mxu0
          %v667 = vpop.f32.mrf.mxu0
          %668 = vdwg.mxu0
          %v669 = vpack.c.bf16 %v664, %v664
          %vm670 = vcmask 257024
          %671 = vst.msk [vmem:[#allocation2] sm:$0xf] %vm670, %v669
          %673 = vrot.lane.b32.xlu0 %v664, 96
          %v674 = vpop.permute.xlu0 %673
          %676 = vxpose.xlu0.b32.start [1/16] %v674, 128
          %677 = vxpose.xlu0.b32.cont [2/16] 0.0, 128
          %678 = vxpose.xlu0.b32.cont [3/16] 0.0, 128
          %679 = vxpose.xlu0.b32.cont [4/16] 0.0, 128
          %680 = vxpose.xlu0.b32.cont [5/16] 0.0, 128
          %681 = vxpose.xlu0.b32.cont [6/16] 0.0, 128
          %682 = vxpose.xlu0.b32.cont [7/16] 0.0, 128
          %683 = vxpose.xlu0.b32.cont [8/16] 0.0, 128
          %684 = vxpose.xlu0.b32.cont [9/16] 0.0, 128
          %685 = vxpose.xlu0.b32.cont [10/16] 0.0, 128
          %686 = vxpose.xlu0.b32.cont [11/16] 0.0, 128
          %687 = vxpose.xlu0.b32.cont [12/16] 0.0, 128
          %688 = vxpose.xlu0.b32.cont [13/16] 0.0, 128
          %689 = vxpose.xlu0.b32.cont [14/16] 0.0, 128
          %690 = vxpose.xlu0.b32.cont [15/16] 0.0, 128
          %691 = vxpose.xlu0.b32.end [16/16] 0.0, 128
          %v692 = vpop.trf.xlu0
          %v693 = vpop.trf.xlu0
          %v694 = vpop.trf.xlu0
          %v695 = vpop.trf.xlu0
          %v696 = vpop.trf.xlu0
          %v697 = vpop.trf.xlu0
          %v698 = vpop.trf.xlu0
          %v699 = vpop.trf.xlu0
          %v700 = vpop.trf.xlu0
          %v701 = vpop.trf.xlu0
          %v702 = vpop.trf.xlu0
          %v703 = vpop.trf.xlu0
          %v704 = vpop.trf.xlu0
          %v705 = vpop.trf.xlu0
          %v706 = vpop.trf.xlu0
          %v707 = vpop.trf.xlu0
          %v708 = vpack.c.bf16 %v693, %v692
          %v709 = vpack.c.bf16 %v695, %v694
          %v712 = vunpack.c.l.b16 %v708
          %v713 = vunpack.c.h.b16 %v708
          %v714 = vunpack.c.l.b16 %v709
          %v715 = vunpack.c.h.b16 %v709
          %v716 = vpack.c.b16 %v712, %v712
          %v717 = vpack.c.b16 %v713, %v713
          %v718 = vpack.c.b16 %v714, %v714
          %v719 = vpack.c.b16 %v715, %v715
          %vm724 = vcmask 60416
          %725 = vst.msk [vmem:[#allocation3] sm:$0xf] %vm724, %v716
          %726 = vst.msk [vmem:[#allocation3 + $0x4] sm:$0xf] %vm724, %v717
          %727 = vst.msk [vmem:[#allocation3 + $0x8] sm:$0xf] %vm724, %v718
          %728 = vst.msk [vmem:[#allocation3 + $0xc] sm:$0xf] %vm724, %v719
          %v730 = vunpack.c.l.b16 %v669
          %v731 = vpack.c.b16 %v730, %v730
          %732 = vrot.lane.b32.xlu0 %v731, 64
          %v733 = vpop.permute.xlu0 %732
          %735 = vst.msk [vmem:[#allocation4] sm:$0xf] %vm670, %v733
        $region80: #{tpu_custom_call.1} parent=55 // pred_fallthru
          _
        %s736 = smul.u32 %s43, 8
        %s737 = sshra.s32 %s736, 3
        %s738 = sand.u32 %s736, 7
        %s739 = smul.addr %s737, 4
        %s740 = scalar_lea.vmem [#allocation2], %s739
        %v741 = vld [vmem:[%s740] sm:$0xf]
        %v742 = vld [vmem:[#allocation3] sm:$0x3]
        %vm743 = vcmask 31744
        %v745 = vsel %vm743, %v741, 0
        %vm747 = vcmask 1041408
        %v749 = vsel %vm747, %v742, 0
        %751 = vmatprep.subr.bf16.mxu0 0
        %752 = vmatpush1.bf16.msra.mxu0 0
        %753 = vmatprep.subr.bf16.mxu0 0
        %754 = vmatpush1.bf16.msra.mxu0 0
        %755 = vmatprep.subr.bf16.mxu0 0
        %756 = vmatpush1.bf16.msra.mxu0 0
        %757 = vmatprep.subr.bf16.mxu0 0
        %758 = vmatpush1.bf16.msra.mxu0 0
        %759 = vmatprep.subr.bf16.mxu0 0
        %760 = vmatpush1.bf16.msra.mxu0 0
        %761 = vmatprep.subr.bf16.mxu0 0
        %762 = vmatpush1.bf16.msra.mxu0 0
        %763 = vmatprep.subr.bf16.mxu0 0
        %764 = vmatpush1.bf16.msra.mxu0 0
        %765 = vmatprep.subr.bf16.mxu0 0
        %766 = vmatpush1.bf16.msra.mxu0 %v749
        %767 = vmatprep.subr.bf16.mxu0 0
        %768 = vmatpush2.bf16.msra.mxu0 0
        %769 = vmatprep.subr.bf16.mxu0 0
        %770 = vmatpush2.bf16.msra.mxu0 0
        %771 = vmatprep.subr.bf16.mxu0 0
        %772 = vmatpush2.bf16.msra.mxu0 0
        %773 = vmatprep.subr.bf16.mxu0 0
        %774 = vmatpush2.bf16.msra.mxu0 0
        %775 = vmatprep.subr.bf16.mxu0 0
        %776 = vmatpush2.bf16.msra.mxu0 0
        %777 = vmatprep.subr.bf16.mxu0 0
        %778 = vmatpush2.bf16.msra.mxu0 0
        %779 = vmatprep.subr.bf16.mxu0 0
        %780 = vmatpush2.bf16.msra.mxu0 0
        %781 = vmatprep.subr.bf16.mxu0 0
        %782 = vmatpush2.bf16.msra.mxu0 0
        %783 = vmatprep.mubr.bf16.mxu0 0
        %784 = vmatmul.mubr.bf16.gmra.mxu0 %v745
        %v785 = vpop.f32.mrf.mxu0
        %v786 = vadd.f32 0.0, %v785
        %v787 = vpop.f32.mrf.mxu0
        %v788 = vpop.f32.mrf.mxu0
        %v789 = vpop.f32.mrf.mxu0
        %790 = vdwg.mxu0
        %vm791 = vcmask 64512
        %v792 = vsel %vm791, %v786, -inf
        %793 = vmax.xlane.f32.xlu0 %v792
        %v794 = vpop.xlane.xlu0 %793
        %v795 = vsub.f32 %v786, %v794
        %v796 = vmul.f32 %v795, 1.442695
        %v797 = vpow.pop %v796
        %v798 = vsel %vm791, %v797, 0.0
        %799 = vadd.xlane.f32.xlu0 %v798
        %v800 = vpop.xlane.xlu0 %799
        %v801 = vrcp.pop %v800
        %v802 = vmul.f32 %v797, %v801
        %v803 = vadd.f32 %v802, 0.0
        %v804 = vld [vmem:[#allocation4] sm:$0xf]
        %v805 = vpack.c.bf16 %v802, %v802
        %v807 = vsel %vm791, %v805, 0
        %vm809 = vcmask 1043456
        %v811 = vsel %vm809, %v804, 0
        %813 = vmatprep.subr.bf16.mxu0 0
        %814 = vmatpush1.bf16.msra.mxu0 0
        %815 = vmatprep.subr.bf16.mxu0 0
        %816 = vmatpush1.bf16.msra.mxu0 0
        %817 = vmatprep.subr.bf16.mxu0 0
        %818 = vmatpush1.bf16.msra.mxu0 0
        %819 = vmatprep.subr.bf16.mxu0 0
        %820 = vmatpush1.bf16.msra.mxu0 0
        %821 = vmatprep.subr.bf16.mxu0 0
        %822 = vmatpush1.bf16.msra.mxu0 0
        %823 = vmatprep.subr.bf16.mxu0 0
        %824 = vmatpush1.bf16.msra.mxu0 0
        %825 = vmatprep.subr.bf16.mxu0 0
        %826 = vmatpush1.bf16.msra.mxu0 0
        %827 = vmatprep.subr.bf16.mxu0 0
        %828 = vmatpush1.bf16.msra.mxu0 %v811
        %829 = vmatprep.subr.bf16.mxu0 0
        %830 = vmatpush2.bf16.msra.mxu0 0
        %831 = vmatprep.subr.bf16.mxu0 0
        %832 = vmatpush2.bf16.msra.mxu0 0
        %833 = vmatprep.subr.bf16.mxu0 0
        %834 = vmatpush2.bf16.msra.mxu0 0
        %835 = vmatprep.subr.bf16.mxu0 0
        %836 = vmatpush2.bf16.msra.mxu0 0
        %837 = vmatprep.subr.bf16.mxu0 0
        %838 = vmatpush2.bf16.msra.mxu0 0
        %839 = vmatprep.subr.bf16.mxu0 0
        %840 = vmatpush2.bf16.msra.mxu0 0
        %841 = vmatprep.subr.bf16.mxu0 0
        %842 = vmatpush2.bf16.msra.mxu0 0
        %843 = vmatprep.subr.bf16.mxu0 0
        %844 = vmatpush2.bf16.msra.mxu0 0
        %845 = vmatprep.mubr.bf16.mxu0 0
        %846 = vmatmul.mubr.bf16.gmra.mxu0 %v807
        %v847 = vpop.f32.mrf.mxu0
        %v848 = vadd.f32 0.0, %v847
        %v849 = vpop.f32.mrf.mxu0
        %v850 = vpop.f32.mrf.mxu0
        %v851 = vpop.f32.mrf.mxu0
        %852 = vdwg.mxu0
        %v853 = vld [vmem:[#allocation3] sm:$0xc]
        %v855 = vunpack.c.l.b16 %v741
        %v856 = vpack.c.b16 %v855, %v855
        %857 = vrot.lane.b32.xlu0 %v856, 124
        %v858 = vpop.permute.xlu0 %857
        %v860 = vunpack.c.l.b16 %v853
        %v861 = vpack.c.b16 %v860, %v860
        %v862 = vrot.slane %v861, 2
        %v864 = vsel %vm743, %v858, 0
        %v867 = vsel %vm747, %v862, 0
        %869 = vmatprep.subr.bf16.mxu0 0
        %870 = vmatpush1.bf16.msra.mxu0 0
        %871 = vmatprep.subr.bf16.mxu0 0
        %872 = vmatpush1.bf16.msra.mxu0 0
        %873 = vmatprep.subr.bf16.mxu0 0
        %874 = vmatpush1.bf16.msra.mxu0 0
        %875 = vmatprep.subr.bf16.mxu0 0
        %876 = vmatpush1.bf16.msra.mxu0 0
        %877 = vmatprep.subr.bf16.mxu0 0
        %878 = vmatpush1.bf16.msra.mxu0 0
        %879 = vmatprep.subr.bf16.mxu0 0
        %880 = vmatpush1.bf16.msra.mxu0 0
        %881 = vmatprep.subr.bf16.mxu0 0
        %882 = vmatpush1.bf16.msra.mxu0 0
        %883 = vmatprep.subr.bf16.mxu0 0
        %884 = vmatpush1.bf16.msra.mxu0 %v867
        %885 = vmatprep.subr.bf16.mxu0 0
        %886 = vmatpush2.bf16.msra.mxu0 0
        %887 = vmatprep.subr.bf16.mxu0 0
        %888 = vmatpush2.bf16.msra.mxu0 0
        %889 = vmatprep.subr.bf16.mxu0 0
        %890 = vmatpush2.bf16.msra.mxu0 0
        %891 = vmatprep.subr.bf16.mxu0 0
        %892 = vmatpush2.bf16.msra.mxu0 0
        %893 = vmatprep.subr.bf16.mxu0 0
        %894 = vmatpush2.bf16.msra.mxu0 0
        %895 = vmatprep.subr.bf16.mxu0 0
        %896 = vmatpush2.bf16.msra.mxu0 0
        %897 = vmatprep.subr.bf16.mxu0 0
        %898 = vmatpush2.bf16.msra.mxu0 0
        %899 = vmatprep.subr.bf16.mxu0 0
        %900 = vmatpush2.bf16.msra.mxu0 0
        %901 = vmatprep.mubr.bf16.mxu0 0
        %902 = vmatmul.mubr.bf16.gmra.mxu0 %v864
        %v903 = vpop.f32.mrf.mxu0
        %v904 = vadd.f32 0.0, %v903
        %v905 = vpop.f32.mrf.mxu0
        %v906 = vpop.f32.mrf.mxu0
        %v907 = vpop.f32.mrf.mxu0
        %908 = vdwg.mxu0
        %v909 = vsel %vm791, %v904, -inf
        %910 = vmax.xlane.f32.xlu0 %v909
        %v911 = vpop.xlane.xlu0 %910
        %v912 = vsub.f32 %v904, %v911
        %v913 = vmul.f32 %v912, 1.442695
        %v914 = vpow.pop %v913
        %v915 = vsel %vm791, %v914, 0.0
        %916 = vadd.xlane.f32.xlu0 %v915
        %v917 = vpop.xlane.xlu0 %916
        %v918 = vrcp.pop %v917
        %v919 = vmul.f32 %v914, %v918
        %v920 = vadd.f32 %v803, %v919
        %v921 = vpack.c.bf16 %v919, %v919
        %v923 = vunpack.c.l.b16 %v804
        %v924 = vpack.c.b16 %v923, %v923
        %925 = vrot.lane.b32.xlu0 %v924, 124
        %v926 = vpop.permute.xlu0 %925
        %v928 = vsel %vm791, %v921, 0
        %v931 = vsel %vm809, %v926, 0
        %933 = vmatprep.subr.bf16.mxu0 0
        %934 = vmatpush1.bf16.msra.mxu0 0
        %935 = vmatprep.subr.bf16.mxu0 0
        %936 = vmatpush1.bf16.msra.mxu0 0
        %937 = vmatprep.subr.bf16.mxu0 0
        %938 = vmatpush1.bf16.msra.mxu0 0
        %939 = vmatprep.subr.bf16.mxu0 0
        %940 = vmatpush1.bf16.msra.mxu0 0
        %941 = vmatprep.subr.bf16.mxu0 0
        %942 = vmatpush1.bf16.msra.mxu0 0
        %943 = vmatprep.subr.bf16.mxu0 0
        %944 = vmatpush1.bf16.msra.mxu0 0
        %945 = vmatprep.subr.bf16.mxu0 0
        %946 = vmatpush1.bf16.msra.mxu0 0
        %947 = vmatprep.subr.bf16.mxu0 0
        %948 = vmatpush1.bf16.msra.mxu0 %v931
        %949 = vmatprep.subr.bf16.mxu0 0
        %950 = vmatpush2.bf16.msra.mxu0 0
        %951 = vmatprep.subr.bf16.mxu0 0
        %952 = vmatpush2.bf16.msra.mxu0 0
        %953 = vmatprep.subr.bf16.mxu0 0
        %954 = vmatpush2.bf16.msra.mxu0 0
        %955 = vmatprep.subr.bf16.mxu0 0
        %956 = vmatpush2.bf16.msra.mxu0 0
        %957 = vmatprep.subr.bf16.mxu0 0
        %958 = vmatpush2.bf16.msra.mxu0 0
        %959 = vmatprep.subr.bf16.mxu0 0
        %960 = vmatpush2.bf16.msra.mxu0 0
        %961 = vmatprep.subr.bf16.mxu0 0
        %962 = vmatpush2.bf16.msra.mxu0 0
        %963 = vmatprep.subr.bf16.mxu0 0
        %964 = vmatpush2.bf16.msra.mxu0 0
        %965 = vmatprep.mubr.bf16.mxu0 0
        %966 = vmatmul.mubr.bf16.gmra.mxu0 %v928
        %v967 = vpop.f32.mrf.mxu0
        %v968 = vadd.f32 0.0, %v967
        %v969 = vpop.f32.mrf.mxu0
        %v970 = vpop.f32.mrf.mxu0
        %v971 = vpop.f32.mrf.mxu0
        %972 = vdwg.mxu0
        %v973 = vld [vmem:[#allocation3 + $0x4] sm:$0x3]
        %974 = vrot.lane.b32.xlu0 %v856, 120
        %v975 = vpop.permute.xlu0 %974
        %v977 = vsel %vm743, %v975, 0
        %v980 = vsel %vm747, %v973, 0
        %982 = vmatprep.subr.bf16.mxu0 0
        %983 = vmatpush1.bf16.msra.mxu0 0
        %984 = vmatprep.subr.bf16.mxu0 0
        %985 = vmatpush1.bf16.msra.mxu0 0
        %986 = vmatprep.subr.bf16.mxu0 0
        %987 = vmatpush1.bf16.msra.mxu0 0
        %988 = vmatprep.subr.bf16.mxu0 0
        %989 = vmatpush1.bf16.msra.mxu0 0
        %990 = vmatprep.subr.bf16.mxu0 0
        %991 = vmatpush1.bf16.msra.mxu0 0
        %992 = vmatprep.subr.bf16.mxu0 0
        %993 = vmatpush1.bf16.msra.mxu0 0
        %994 = vmatprep.subr.bf16.mxu0 0
        %995 = vmatpush1.bf16.msra.mxu0 0
        %996 = vmatprep.subr.bf16.mxu0 0
        %997 = vmatpush1.bf16.msra.mxu0 %v980
        %998 = vmatprep.subr.bf16.mxu0 0
        %999 = vmatpush2.bf16.msra.mxu0 0
        %1000 = vmatprep.subr.bf16.mxu0 0
        %1001 = vmatpush2.bf16.msra.mxu0 0
        %1002 = vmatprep.subr.bf16.mxu0 0
        %1003 = vmatpush2.bf16.msra.mxu0 0
        %1004 = vmatprep.subr.bf16.mxu0 0
        %1005 = vmatpush2.bf16.msra.mxu0 0
        %1006 = vmatprep.subr.bf16.mxu0 0
        %1007 = vmatpush2.bf16.msra.mxu0 0
        %1008 = vmatprep.subr.bf16.mxu0 0
        %1009 = vmatpush2.bf16.msra.mxu0 0
        %1010 = vmatprep.subr.bf16.mxu0 0
        %1011 = vmatpush2.bf16.msra.mxu0 0
        %1012 = vmatprep.subr.bf16.mxu0 0
        %1013 = vmatpush2.bf16.msra.mxu0 0
        %1014 = vmatprep.mubr.bf16.mxu0 0
        %1015 = vmatmul.mubr.bf16.gmra.mxu0 %v977
        %v1016 = vpop.f32.mrf.mxu0
        %v1017 = vadd.f32 0.0, %v1016
        %v1018 = vpop.f32.mrf.mxu0
        %v1019 = vpop.f32.mrf.mxu0
        %v1020 = vpop.f32.mrf.mxu0
        %1021 = vdwg.mxu0
        %v1022 = vsel %vm791, %v1017, -inf
        %1023 = vmax.xlane.f32.xlu0 %v1022
        %v1024 = vpop.xlane.xlu0 %1023
        %v1025 = vsub.f32 %v1017, %v1024
        %v1026 = vmul.f32 %v1025, 1.442695
        %v1027 = vpow.pop %v1026
        %v1028 = vsel %vm791, %v1027, 0.0
        %1029 = vadd.xlane.f32.xlu0 %v1028
        %v1030 = vpop.xlane.xlu0 %1029
        %v1031 = vrcp.pop %v1030
        %v1032 = vmul.f32 %v1027, %v1031
        %v1033 = vadd.f32 %v920, %v1032
        %v1034 = vpack.c.bf16 %v1032, %v1032
        %1035 = vrot.lane.b32.xlu0 %v924, 120
        %v1036 = vpop.permute.xlu0 %1035
        %v1038 = vsel %vm791, %v1034, 0
        %v1041 = vsel %vm809, %v1036, 0
        %1043 = vmatprep.subr.bf16.mxu0 0
        %1044 = vmatpush1.bf16.msra.mxu0 0
        %1045 = vmatprep.subr.bf16.mxu0 0
        %1046 = vmatpush1.bf16.msra.mxu0 0
        %1047 = vmatprep.subr.bf16.mxu0 0
        %1048 = vmatpush1.bf16.msra.mxu0 0
        %1049 = vmatprep.subr.bf16.mxu0 0
        %1050 = vmatpush1.bf16.msra.mxu0 0
        %1051 = vmatprep.subr.bf16.mxu0 0
        %1052 = vmatpush1.bf16.msra.mxu0 0
        %1053 = vmatprep.subr.bf16.mxu0 0
        %1054 = vmatpush1.bf16.msra.mxu0 0
        %1055 = vmatprep.subr.bf16.mxu0 0
        %1056 = vmatpush1.bf16.msra.mxu0 0
        %1057 = vmatprep.subr.bf16.mxu0 0
        %1058 = vmatpush1.bf16.msra.mxu0 %v1041
        %1059 = vmatprep.subr.bf16.mxu0 0
        %1060 = vmatpush2.bf16.msra.mxu0 0
        %1061 = vmatprep.subr.bf16.mxu0 0
        %1062 = vmatpush2.bf16.msra.mxu0 0
        %1063 = vmatprep.subr.bf16.mxu0 0
        %1064 = vmatpush2.bf16.msra.mxu0 0
        %1065 = vmatprep.subr.bf16.mxu0 0
        %1066 = vmatpush2.bf16.msra.mxu0 0
        %1067 = vmatprep.subr.bf16.mxu0 0
        %1068 = vmatpush2.bf16.msra.mxu0 0
        %1069 = vmatprep.subr.bf16.mxu0 0
        %1070 = vmatpush2.bf16.msra.mxu0 0
        %1071 = vmatprep.subr.bf16.mxu0 0
        %1072 = vmatpush2.bf16.msra.mxu0 0
        %1073 = vmatprep.subr.bf16.mxu0 0
        %1074 = vmatpush2.bf16.msra.mxu0 0
        %1075 = vmatprep.mubr.bf16.mxu0 0
        %1076 = vmatmul.mubr.bf16.gmra.mxu0 %v1038
        %v1077 = vpop.f32.mrf.mxu0
        %v1078 = vadd.f32 0.0, %v1077
        %v1079 = vpop.f32.mrf.mxu0
        %v1080 = vpop.f32.mrf.mxu0
        %v1081 = vpop.f32.mrf.mxu0
        %1082 = vdwg.mxu0
        %v1083 = vld [vmem:[#allocation3 + $0x4] sm:$0xc]
        %1084 = vrot.lane.b32.xlu0 %v856, 116
        %v1085 = vpop.permute.xlu0 %1084
        %v1087 = vunpack.c.l.b16 %v1083
        %v1088 = vpack.c.b16 %v1087, %v1087
        %v1089 = vrot.slane %v1088, 2
        %v1091 = vsel %vm743, %v1085, 0
        %v1094 = vsel %vm747, %v1089, 0
        %1096 = vmatprep.subr.bf16.mxu0 0
        %1097 = vmatpush1.bf16.msra.mxu0 0
        %1098 = vmatprep.subr.bf16.mxu0 0
        %1099 = vmatpush1.bf16.msra.mxu0 0
        %1100 = vmatprep.subr.bf16.mxu0 0
        %1101 = vmatpush1.bf16.msra.mxu0 0
        %1102 = vmatprep.subr.bf16.mxu0 0
        %1103 = vmatpush1.bf16.msra.mxu0 0
        %1104 = vmatprep.subr.bf16.mxu0 0
        %1105 = vmatpush1.bf16.msra.mxu0 0
        %1106 = vmatprep.subr.bf16.mxu0 0
        %1107 = vmatpush1.bf16.msra.mxu0 0
        %1108 = vmatprep.subr.bf16.mxu0 0
        %1109 = vmatpush1.bf16.msra.mxu0 0
        %1110 = vmatprep.subr.bf16.mxu0 0
        %1111 = vmatpush1.bf16.msra.mxu0 %v1094
        %1112 = vmatprep.subr.bf16.mxu0 0
        %1113 = vmatpush2.bf16.msra.mxu0 0
        %1114 = vmatprep.subr.bf16.mxu0 0
        %1115 = vmatpush2.bf16.msra.mxu0 0
        %1116 = vmatprep.subr.bf16.mxu0 0
        %1117 = vmatpush2.bf16.msra.mxu0 0
        %1118 = vmatprep.subr.bf16.mxu0 0
        %1119 = vmatpush2.bf16.msra.mxu0 0
        %1120 = vmatprep.subr.bf16.mxu0 0
        %1121 = vmatpush2.bf16.msra.mxu0 0
        %1122 = vmatprep.subr.bf16.mxu0 0
        %1123 = vmatpush2.bf16.msra.mxu0 0
        %1124 = vmatprep.subr.bf16.mxu0 0
        %1125 = vmatpush2.bf16.msra.mxu0 0
        %1126 = vmatprep.subr.bf16.mxu0 0
        %1127 = vmatpush2.bf16.msra.mxu0 0
        %1128 = vmatprep.mubr.bf16.mxu0 0
        %1129 = vmatmul.mubr.bf16.gmra.mxu0 %v1091
        %v1130 = vpop.f32.mrf.mxu0
        %v1131 = vadd.f32 0.0, %v1130
        %v1132 = vpop.f32.mrf.mxu0
        %v1133 = vpop.f32.mrf.mxu0
        %v1134 = vpop.f32.mrf.mxu0
        %1135 = vdwg.mxu0
        %v1136 = vsel %vm791, %v1131, -inf
        %1137 = vmax.xlane.f32.xlu0 %v1136
        %v1138 = vpop.xlane.xlu0 %1137
        %v1139 = vsub.f32 %v1131, %v1138
        %v1140 = vmul.f32 %v1139, 1.442695
        %v1141 = vpow.pop %v1140
        %v1142 = vsel %vm791, %v1141, 0.0
        %1143 = vadd.xlane.f32.xlu0 %v1142
        %v1144 = vpop.xlane.xlu0 %1143
        %v1145 = vrcp.pop %v1144
        %v1146 = vmul.f32 %v1141, %v1145
        %v1147 = vadd.f32 %v1033, %v1146
        %v1148 = vpack.c.bf16 %v1146, %v1146
        %1149 = vrot.lane.b32.xlu0 %v924, 116
        %v1150 = vpop.permute.xlu0 %1149
        %v1152 = vsel %vm791, %v1148, 0
        %v1155 = vsel %vm809, %v1150, 0
        %1157 = vmatprep.subr.bf16.mxu0 0
        %1158 = vmatpush1.bf16.msra.mxu0 0
        %1159 = vmatprep.subr.bf16.mxu0 0
        %1160 = vmatpush1.bf16.msra.mxu0 0
        %1161 = vmatprep.subr.bf16.mxu0 0
        %1162 = vmatpush1.bf16.msra.mxu0 0
        %1163 = vmatprep.subr.bf16.mxu0 0
        %1164 = vmatpush1.bf16.msra.mxu0 0
        %1165 = vmatprep.subr.bf16.mxu0 0
        %1166 = vmatpush1.bf16.msra.mxu0 0
        %1167 = vmatprep.subr.bf16.mxu0 0
        %1168 = vmatpush1.bf16.msra.mxu0 0
        %1169 = vmatprep.subr.bf16.mxu0 0
        %1170 = vmatpush1.bf16.msra.mxu0 0
        %1171 = vmatprep.subr.bf16.mxu0 0
        %1172 = vmatpush1.bf16.msra.mxu0 %v1155
        %1173 = vmatprep.subr.bf16.mxu0 0
        %1174 = vmatpush2.bf16.msra.mxu0 0
        %1175 = vmatprep.subr.bf16.mxu0 0
        %1176 = vmatpush2.bf16.msra.mxu0 0
        %1177 = vmatprep.subr.bf16.mxu0 0
        %1178 = vmatpush2.bf16.msra.mxu0 0
        %1179 = vmatprep.subr.bf16.mxu0 0
        %1180 = vmatpush2.bf16.msra.mxu0 0
        %1181 = vmatprep.subr.bf16.mxu0 0
        %1182 = vmatpush2.bf16.msra.mxu0 0
        %1183 = vmatprep.subr.bf16.mxu0 0
        %1184 = vmatpush2.bf16.msra.mxu0 0
        %1185 = vmatprep.subr.bf16.mxu0 0
        %1186 = vmatpush2.bf16.msra.mxu0 0
        %1187 = vmatprep.subr.bf16.mxu0 0
        %1188 = vmatpush2.bf16.msra.mxu0 0
        %1189 = vmatprep.mubr.bf16.mxu0 0
        %1190 = vmatmul.mubr.bf16.gmra.mxu0 %v1152
        %v1191 = vpop.f32.mrf.mxu0
        %v1192 = vadd.f32 0.0, %v1191
        %v1193 = vpop.f32.mrf.mxu0
        %v1194 = vpop.f32.mrf.mxu0
        %v1195 = vpop.f32.mrf.mxu0
        %1196 = vdwg.mxu0
        %v1197 = vld [vmem:[#allocation3 + $0x8] sm:$0x3]
        %1198 = vrot.lane.b32.xlu0 %v856, 112
        %v1199 = vpop.permute.xlu0 %1198
        %v1201 = vsel %vm743, %v1199, 0
        %v1204 = vsel %vm747, %v1197, 0
        %1206 = vmatprep.subr.bf16.mxu0 0
        %1207 = vmatpush1.bf16.msra.mxu0 0
        %1208 = vmatprep.subr.bf16.mxu0 0
        %1209 = vmatpush1.bf16.msra.mxu0 0
        %1210 = vmatprep.subr.bf16.mxu0 0
        %1211 = vmatpush1.bf16.msra.mxu0 0
        %1212 = vmatprep.subr.bf16.mxu0 0
        %1213 = vmatpush1.bf16.msra.mxu0 0
        %1214 = vmatprep.subr.bf16.mxu0 0
        %1215 = vmatpush1.bf16.msra.mxu0 0
        %1216 = vmatprep.subr.bf16.mxu0 0
        %1217 = vmatpush1.bf16.msra.mxu0 0
        %1218 = vmatprep.subr.bf16.mxu0 0
        %1219 = vmatpush1.bf16.msra.mxu0 0
        %1220 = vmatprep.subr.bf16.mxu0 0
        %1221 = vmatpush1.bf16.msra.mxu0 %v1204
        %1222 = vmatprep.subr.bf16.mxu0 0
        %1223 = vmatpush2.bf16.msra.mxu0 0
        %1224 = vmatprep.subr.bf16.mxu0 0
        %1225 = vmatpush2.bf16.msra.mxu0 0
        %1226 = vmatprep.subr.bf16.mxu0 0
        %1227 = vmatpush2.bf16.msra.mxu0 0
        %1228 = vmatprep.subr.bf16.mxu0 0
        %1229 = vmatpush2.bf16.msra.mxu0 0
        %1230 = vmatprep.subr.bf16.mxu0 0
        %1231 = vmatpush2.bf16.msra.mxu0 0
        %1232 = vmatprep.subr.bf16.mxu0 0
        %1233 = vmatpush2.bf16.msra.mxu0 0
        %1234 = vmatprep.subr.bf16.mxu0 0
        %1235 = vmatpush2.bf16.msra.mxu0 0
        %1236 = vmatprep.subr.bf16.mxu0 0
        %1237 = vmatpush2.bf16.msra.mxu0 0
        %1238 = vmatprep.mubr.bf16.mxu0 0
        %1239 = vmatmul.mubr.bf16.gmra.mxu0 %v1201
        %v1240 = vpop.f32.mrf.mxu0
        %v1241 = vadd.f32 0.0, %v1240
        %v1242 = vpop.f32.mrf.mxu0
        %v1243 = vpop.f32.mrf.mxu0
        %v1244 = vpop.f32.mrf.mxu0
        %1245 = vdwg.mxu0
        %v1246 = vsel %vm791, %v1241, -inf
        %1247 = vmax.xlane.f32.xlu0 %v1246
        %v1248 = vpop.xlane.xlu0 %1247
        %v1249 = vsub.f32 %v1241, %v1248
        %v1250 = vmul.f32 %v1249, 1.442695
        %v1251 = vpow.pop %v1250
        %v1252 = vsel %vm791, %v1251, 0.0
        %1253 = vadd.xlane.f32.xlu0 %v1252
        %v1254 = vpop.xlane.xlu0 %1253
        %v1255 = vrcp.pop %v1254
        %v1256 = vmul.f32 %v1251, %v1255
        %v1257 = vadd.f32 %v1147, %v1256
        %v1258 = vpack.c.bf16 %v1256, %v1256
        %1259 = vrot.lane.b32.xlu0 %v924, 112
        %v1260 = vpop.permute.xlu0 %1259
        %v1262 = vsel %vm791, %v1258, 0
        %v1265 = vsel %vm809, %v1260, 0
        %1267 = vmatprep.subr.bf16.mxu0 0
        %1268 = vmatpush1.bf16.msra.mxu0 0
        %1269 = vmatprep.subr.bf16.mxu0 0
        %1270 = vmatpush1.bf16.msra.mxu0 0
        %1271 = vmatprep.subr.bf16.mxu0 0
        %1272 = vmatpush1.bf16.msra.mxu0 0
        %1273 = vmatprep.subr.bf16.mxu0 0
        %1274 = vmatpush1.bf16.msra.mxu0 0
        %1275 = vmatprep.subr.bf16.mxu0 0
        %1276 = vmatpush1.bf16.msra.mxu0 0
        %1277 = vmatprep.subr.bf16.mxu0 0
        %1278 = vmatpush1.bf16.msra.mxu0 0
        %1279 = vmatprep.subr.bf16.mxu0 0
        %1280 = vmatpush1.bf16.msra.mxu0 0
        %1281 = vmatprep.subr.bf16.mxu0 0
        %1282 = vmatpush1.bf16.msra.mxu0 %v1265
        %1283 = vmatprep.subr.bf16.mxu0 0
        %1284 = vmatpush2.bf16.msra.mxu0 0
        %1285 = vmatprep.subr.bf16.mxu0 0
        %1286 = vmatpush2.bf16.msra.mxu0 0
        %1287 = vmatprep.subr.bf16.mxu0 0
        %1288 = vmatpush2.bf16.msra.mxu0 0
        %1289 = vmatprep.subr.bf16.mxu0 0
        %1290 = vmatpush2.bf16.msra.mxu0 0
        %1291 = vmatprep.subr.bf16.mxu0 0
        %1292 = vmatpush2.bf16.msra.mxu0 0
        %1293 = vmatprep.subr.bf16.mxu0 0
        %1294 = vmatpush2.bf16.msra.mxu0 0
        %1295 = vmatprep.subr.bf16.mxu0 0
        %1296 = vmatpush2.bf16.msra.mxu0 0
        %1297 = vmatprep.subr.bf16.mxu0 0
        %1298 = vmatpush2.bf16.msra.mxu0 0
        %1299 = vmatprep.mubr.bf16.mxu0 0
        %1300 = vmatmul.mubr.bf16.gmra.mxu0 %v1262
        %v1301 = vpop.f32.mrf.mxu0
        %v1302 = vadd.f32 0.0, %v1301
        %v1303 = vpop.f32.mrf.mxu0
        %v1304 = vpop.f32.mrf.mxu0
        %v1305 = vpop.f32.mrf.mxu0
        %1306 = vdwg.mxu0
        %v1307 = vld [vmem:[#allocation3 + $0x8] sm:$0xc]
        %1308 = vrot.lane.b32.xlu0 %v856, 108
        %v1309 = vpop.permute.xlu0 %1308
        %v1311 = vunpack.c.l.b16 %v1307
        %v1312 = vpack.c.b16 %v1311, %v1311
        %v1313 = vrot.slane %v1312, 2
        %v1315 = vsel %vm743, %v1309, 0
        %v1318 = vsel %vm747, %v1313, 0
        %1320 = vmatprep.subr.bf16.mxu0 0
        %1321 = vmatpush1.bf16.msra.mxu0 0
        %1322 = vmatprep.subr.bf16.mxu0 0
        %1323 = vmatpush1.bf16.msra.mxu0 0
        %1324 = vmatprep.subr.bf16.mxu0 0
        %1325 = vmatpush1.bf16.msra.mxu0 0
        %1326 = vmatprep.subr.bf16.mxu0 0
        %1327 = vmatpush1.bf16.msra.mxu0 0
        %1328 = vmatprep.subr.bf16.mxu0 0
        %1329 = vmatpush1.bf16.msra.mxu0 0
        %1330 = vmatprep.subr.bf16.mxu0 0
        %1331 = vmatpush1.bf16.msra.mxu0 0
        %1332 = vmatprep.subr.bf16.mxu0 0
        %1333 = vmatpush1.bf16.msra.mxu0 0
        %1334 = vmatprep.subr.bf16.mxu0 0
        %1335 = vmatpush1.bf16.msra.mxu0 %v1318
        %1336 = vmatprep.subr.bf16.mxu0 0
        %1337 = vmatpush2.bf16.msra.mxu0 0
        %1338 = vmatprep.subr.bf16.mxu0 0
        %1339 = vmatpush2.bf16.msra.mxu0 0
        %1340 = vmatprep.subr.bf16.mxu0 0
        %1341 = vmatpush2.bf16.msra.mxu0 0
        %1342 = vmatprep.subr.bf16.mxu0 0
        %1343 = vmatpush2.bf16.msra.mxu0 0
        %1344 = vmatprep.subr.bf16.mxu0 0
        %1345 = vmatpush2.bf16.msra.mxu0 0
        %1346 = vmatprep.subr.bf16.mxu0 0
        %1347 = vmatpush2.bf16.msra.mxu0 0
        %1348 = vmatprep.subr.bf16.mxu0 0
        %1349 = vmatpush2.bf16.msra.mxu0 0
        %1350 = vmatprep.subr.bf16.mxu0 0
        %1351 = vmatpush2.bf16.msra.mxu0 0
        %1352 = vmatprep.mubr.bf16.mxu0 0
        %1353 = vmatmul.mubr.bf16.gmra.mxu0 %v1315
        %v1354 = vpop.f32.mrf.mxu0
        %v1355 = vadd.f32 0.0, %v1354
        %v1356 = vpop.f32.mrf.mxu0
        %v1357 = vpop.f32.mrf.mxu0
        %v1358 = vpop.f32.mrf.mxu0
        %1359 = vdwg.mxu0
        %v1360 = vsel %vm791, %v1355, -inf
        %1361 = vmax.xlane.f32.xlu0 %v1360
        %v1362 = vpop.xlane.xlu0 %1361
        %v1363 = vsub.f32 %v1355, %v1362
        %v1364 = vmul.f32 %v1363, 1.442695
        %v1365 = vpow.pop %v1364
        %v1366 = vsel %vm791, %v1365, 0.0
        %1367 = vadd.xlane.f32.xlu0 %v1366
        %v1368 = vpop.xlane.xlu0 %1367
        %v1369 = vrcp.pop %v1368
        %v1370 = vmul.f32 %v1365, %v1369
        %v1371 = vadd.f32 %v1257, %v1370
        %v1372 = vpack.c.bf16 %v1370, %v1370
        %1373 = vrot.lane.b32.xlu0 %v924, 108
        %v1374 = vpop.permute.xlu0 %1373
        %v1376 = vsel %vm791, %v1372, 0
        %v1379 = vsel %vm809, %v1374, 0
        %1381 = vmatprep.subr.bf16.mxu0 0
        %1382 = vmatpush1.bf16.msra.mxu0 0
        %1383 = vmatprep.subr.bf16.mxu0 0
        %1384 = vmatpush1.bf16.msra.mxu0 0
        %1385 = vmatprep.subr.bf16.mxu0 0
        %1386 = vmatpush1.bf16.msra.mxu0 0
        %1387 = vmatprep.subr.bf16.mxu0 0
        %1388 = vmatpush1.bf16.msra.mxu0 0
        %1389 = vmatprep.subr.bf16.mxu0 0
        %1390 = vmatpush1.bf16.msra.mxu0 0
        %1391 = vmatprep.subr.bf16.mxu0 0
        %1392 = vmatpush1.bf16.msra.mxu0 0
        %1393 = vmatprep.subr.bf16.mxu0 0
        %1394 = vmatpush1.bf16.msra.mxu0 0
        %1395 = vmatprep.subr.bf16.mxu0 0
        %1396 = vmatpush1.bf16.msra.mxu0 %v1379
        %1397 = vmatprep.subr.bf16.mxu0 0
        %1398 = vmatpush2.bf16.msra.mxu0 0
        %1399 = vmatprep.subr.bf16.mxu0 0
        %1400 = vmatpush2.bf16.msra.mxu0 0
        %1401 = vmatprep.subr.bf16.mxu0 0
        %1402 = vmatpush2.bf16.msra.mxu0 0
        %1403 = vmatprep.subr.bf16.mxu0 0
        %1404 = vmatpush2.bf16.msra.mxu0 0
        %1405 = vmatprep.subr.bf16.mxu0 0
        %1406 = vmatpush2.bf16.msra.mxu0 0
        %1407 = vmatprep.subr.bf16.mxu0 0
        %1408 = vmatpush2.bf16.msra.mxu0 0
        %1409 = vmatprep.subr.bf16.mxu0 0
        %1410 = vmatpush2.bf16.msra.mxu0 0
        %1411 = vmatprep.subr.bf16.mxu0 0
        %1412 = vmatpush2.bf16.msra.mxu0 0
        %1413 = vmatprep.mubr.bf16.mxu0 0
        %1414 = vmatmul.mubr.bf16.gmra.mxu0 %v1376
        %v1415 = vpop.f32.mrf.mxu0
        %v1416 = vadd.f32 0.0, %v1415
        %v1417 = vpop.f32.mrf.mxu0
        %v1418 = vpop.f32.mrf.mxu0
        %v1419 = vpop.f32.mrf.mxu0
        %1420 = vdwg.mxu0
        %v1421 = vld [vmem:[#allocation3 + $0xc] sm:$0x3]
        %1422 = vrot.lane.b32.xlu0 %v856, 104
        %v1423 = vpop.permute.xlu0 %1422
        %v1425 = vsel %vm743, %v1423, 0
        %v1428 = vsel %vm747, %v1421, 0
        %1430 = vmatprep.subr.bf16.mxu0 0
        %1431 = vmatpush1.bf16.msra.mxu0 0
        %1432 = vmatprep.subr.bf16.mxu0 0
        %1433 = vmatpush1.bf16.msra.mxu0 0
        %1434 = vmatprep.subr.bf16.mxu0 0
        %1435 = vmatpush1.bf16.msra.mxu0 0
        %1436 = vmatprep.subr.bf16.mxu0 0
        %1437 = vmatpush1.bf16.msra.mxu0 0
        %1438 = vmatprep.subr.bf16.mxu0 0
        %1439 = vmatpush1.bf16.msra.mxu0 0
        %1440 = vmatprep.subr.bf16.mxu0 0
        %1441 = vmatpush1.bf16.msra.mxu0 0
        %1442 = vmatprep.subr.bf16.mxu0 0
        %1443 = vmatpush1.bf16.msra.mxu0 0
        %1444 = vmatprep.subr.bf16.mxu0 0
        %1445 = vmatpush1.bf16.msra.mxu0 %v1428
        %1446 = vmatprep.subr.bf16.mxu0 0
        %1447 = vmatpush2.bf16.msra.mxu0 0
        %1448 = vmatprep.subr.bf16.mxu0 0
        %1449 = vmatpush2.bf16.msra.mxu0 0
        %1450 = vmatprep.subr.bf16.mxu0 0
        %1451 = vmatpush2.bf16.msra.mxu0 0
        %1452 = vmatprep.subr.bf16.mxu0 0
        %1453 = vmatpush2.bf16.msra.mxu0 0
        %1454 = vmatprep.subr.bf16.mxu0 0
        %1455 = vmatpush2.bf16.msra.mxu0 0
        %1456 = vmatprep.subr.bf16.mxu0 0
        %1457 = vmatpush2.bf16.msra.mxu0 0
        %1458 = vmatprep.subr.bf16.mxu0 0
        %1459 = vmatpush2.bf16.msra.mxu0 0
        %1460 = vmatprep.subr.bf16.mxu0 0
        %1461 = vmatpush2.bf16.msra.mxu0 0
        %1462 = vmatprep.mubr.bf16.mxu0 0
        %1463 = vmatmul.mubr.bf16.gmra.mxu0 %v1425
        %v1464 = vpop.f32.mrf.mxu0
        %v1465 = vadd.f32 0.0, %v1464
        %v1466 = vpop.f32.mrf.mxu0
        %v1467 = vpop.f32.mrf.mxu0
        %v1468 = vpop.f32.mrf.mxu0
        %1469 = vdwg.mxu0
        %v1470 = vsel %vm791, %v1465, -inf
        %1471 = vmax.xlane.f32.xlu0 %v1470
        %v1472 = vpop.xlane.xlu0 %1471
        %v1473 = vsub.f32 %v1465, %v1472
        %v1474 = vmul.f32 %v1473, 1.442695
        %v1475 = vpow.pop %v1474
        %v1476 = vsel %vm791, %v1475, 0.0
        %1477 = vadd.xlane.f32.xlu0 %v1476
        %v1478 = vpop.xlane.xlu0 %1477
        %v1479 = vrcp.pop %v1478
        %v1480 = vmul.f32 %v1475, %v1479
        %v1481 = vadd.f32 %v1371, %v1480
        %v1482 = vpack.c.bf16 %v1480, %v1480
        %1483 = vrot.lane.b32.xlu0 %v924, 104
        %v1484 = vpop.permute.xlu0 %1483
        %v1486 = vsel %vm791, %v1482, 0
        %v1489 = vsel %vm809, %v1484, 0
        %1491 = vmatprep.subr.bf16.mxu0 0
        %1492 = vmatpush1.bf16.msra.mxu0 0
        %1493 = vmatprep.subr.bf16.mxu0 0
        %1494 = vmatpush1.bf16.msra.mxu0 0
        %1495 = vmatprep.subr.bf16.mxu0 0
        %1496 = vmatpush1.bf16.msra.mxu0 0
        %1497 = vmatprep.subr.bf16.mxu0 0
        %1498 = vmatpush1.bf16.msra.mxu0 0
        %1499 = vmatprep.subr.bf16.mxu0 0
        %1500 = vmatpush1.bf16.msra.mxu0 0
        %1501 = vmatprep.subr.bf16.mxu0 0
        %1502 = vmatpush1.bf16.msra.mxu0 0
        %1503 = vmatprep.subr.bf16.mxu0 0
        %1504 = vmatpush1.bf16.msra.mxu0 0
        %1505 = vmatprep.subr.bf16.mxu0 0
        %1506 = vmatpush1.bf16.msra.mxu0 %v1489
        %1507 = vmatprep.subr.bf16.mxu0 0
        %1508 = vmatpush2.bf16.msra.mxu0 0
        %1509 = vmatprep.subr.bf16.mxu0 0
        %1510 = vmatpush2.bf16.msra.mxu0 0
        %1511 = vmatprep.subr.bf16.mxu0 0
        %1512 = vmatpush2.bf16.msra.mxu0 0
        %1513 = vmatprep.subr.bf16.mxu0 0
        %1514 = vmatpush2.bf16.msra.mxu0 0
        %1515 = vmatprep.subr.bf16.mxu0 0
        %1516 = vmatpush2.bf16.msra.mxu0 0
        %1517 = vmatprep.subr.bf16.mxu0 0
        %1518 = vmatpush2.bf16.msra.mxu0 0
        %1519 = vmatprep.subr.bf16.mxu0 0
        %1520 = vmatpush2.bf16.msra.mxu0 0
        %1521 = vmatprep.subr.bf16.mxu0 0
        %1522 = vmatpush2.bf16.msra.mxu0 0
        %1523 = vmatprep.mubr.bf16.mxu0 0
        %1524 = vmatmul.mubr.bf16.gmra.mxu0 %v1486
        %v1525 = vpop.f32.mrf.mxu0
        %v1526 = vadd.f32 0.0, %v1525
        %v1527 = vpop.f32.mrf.mxu0
        %v1528 = vpop.f32.mrf.mxu0
        %v1529 = vpop.f32.mrf.mxu0
        %1530 = vdwg.mxu0
        %v1531 = vld [vmem:[#allocation3 + $0xc] sm:$0xc]
        %1532 = vrot.lane.b32.xlu0 %v856, 100
        %v1533 = vpop.permute.xlu0 %1532
        %v1535 = vunpack.c.l.b16 %v1531
        %v1536 = vpack.c.b16 %v1535, %v1535
        %v1537 = vrot.slane %v1536, 2
        %v1539 = vsel %vm743, %v1533, 0
        %v1542 = vsel %vm747, %v1537, 0
        %1544 = vmatprep.subr.bf16.mxu0 0
        %1545 = vmatpush1.bf16.msra.mxu0 0
        %1546 = vmatprep.subr.bf16.mxu0 0
        %1547 = vmatpush1.bf16.msra.mxu0 0
        %1548 = vmatprep.subr.bf16.mxu0 0
        %1549 = vmatpush1.bf16.msra.mxu0 0
        %1550 = vmatprep.subr.bf16.mxu0 0
        %1551 = vmatpush1.bf16.msra.mxu0 0
        %1552 = vmatprep.subr.bf16.mxu0 0
        %1553 = vmatpush1.bf16.msra.mxu0 0
        %1554 = vmatprep.subr.bf16.mxu0 0
        %1555 = vmatpush1.bf16.msra.mxu0 0
        %1556 = vmatprep.subr.bf16.mxu0 0
        %1557 = vmatpush1.bf16.msra.mxu0 0
        %1558 = vmatprep.subr.bf16.mxu0 0
        %1559 = vmatpush1.bf16.msra.mxu0 %v1542
        %1560 = vmatprep.subr.bf16.mxu0 0
        %1561 = vmatpush2.bf16.msra.mxu0 0
        %1562 = vmatprep.subr.bf16.mxu0 0
        %1563 = vmatpush2.bf16.msra.mxu0 0
        %1564 = vmatprep.subr.bf16.mxu0 0
        %1565 = vmatpush2.bf16.msra.mxu0 0
        %1566 = vmatprep.subr.bf16.mxu0 0
        %1567 = vmatpush2.bf16.msra.mxu0 0
        %1568 = vmatprep.subr.bf16.mxu0 0
        %1569 = vmatpush2.bf16.msra.mxu0 0
        %1570 = vmatprep.subr.bf16.mxu0 0
        %1571 = vmatpush2.bf16.msra.mxu0 0
        %1572 = vmatprep.subr.bf16.mxu0 0
        %1573 = vmatpush2.bf16.msra.mxu0 0
        %1574 = vmatprep.subr.bf16.mxu0 0
        %1575 = vmatpush2.bf16.msra.mxu0 0
        %1576 = vmatprep.mubr.bf16.mxu0 0
        %1577 = vmatmul.mubr.bf16.gmra.mxu0 %v1539
        %v1578 = vpop.f32.mrf.mxu0
        %v1579 = vadd.f32 0.0, %v1578
        %v1580 = vpop.f32.mrf.mxu0
        %v1581 = vpop.f32.mrf.mxu0
        %v1582 = vpop.f32.mrf.mxu0
        %1583 = vdwg.mxu0
        %v1584 = vsel %vm791, %v1579, -inf
        %1585 = vmax.xlane.f32.xlu0 %v1584
        %v1586 = vpop.xlane.xlu0 %1585
        %v1587 = vsub.f32 %v1579, %v1586
        %v1588 = vmul.f32 %v1587, 1.442695
        %v1589 = vpow.pop %v1588
        %v1590 = vsel %vm791, %v1589, 0.0
        %1591 = vadd.xlane.f32.xlu0 %v1590
        %v1592 = vpop.xlane.xlu0 %1591
        %v1593 = vrcp.pop %v1592
        %v1594 = vmul.f32 %v1589, %v1593
        %v1595 = vadd.f32 %v1481, %v1594
        %v1596 = vpack.c.bf16 %v1594, %v1594
        %1597 = vrot.lane.b32.xlu0 %v924, 100
        %v1598 = vpop.permute.xlu0 %1597
        %v1600 = vsel %vm791, %v1596, 0
        %v1603 = vsel %vm809, %v1598, 0
        %1605 = vmatprep.subr.bf16.mxu0 0
        %1606 = vmatpush1.bf16.msra.mxu0 0
        %1607 = vmatprep.subr.bf16.mxu0 0
        %1608 = vmatpush1.bf16.msra.mxu0 0
        %1609 = vmatprep.subr.bf16.mxu0 0
        %1610 = vmatpush1.bf16.msra.mxu0 0
        %1611 = vmatprep.subr.bf16.mxu0 0
        %1612 = vmatpush1.bf16.msra.mxu0 0
        %1613 = vmatprep.subr.bf16.mxu0 0
        %1614 = vmatpush1.bf16.msra.mxu0 0
        %1615 = vmatprep.subr.bf16.mxu0 0
        %1616 = vmatpush1.bf16.msra.mxu0 0
        %1617 = vmatprep.subr.bf16.mxu0 0
        %1618 = vmatpush1.bf16.msra.mxu0 0
        %1619 = vmatprep.subr.bf16.mxu0 0
        %1620 = vmatpush1.bf16.msra.mxu0 %v1603
        %1621 = vmatprep.subr.bf16.mxu0 0
        %1622 = vmatpush2.bf16.msra.mxu0 0
        %1623 = vmatprep.subr.bf16.mxu0 0
        %1624 = vmatpush2.bf16.msra.mxu0 0
        %1625 = vmatprep.subr.bf16.mxu0 0
        %1626 = vmatpush2.bf16.msra.mxu0 0
        %1627 = vmatprep.subr.bf16.mxu0 0
        %1628 = vmatpush2.bf16.msra.mxu0 0
        %1629 = vmatprep.subr.bf16.mxu0 0
        %1630 = vmatpush2.bf16.msra.mxu0 0
        %1631 = vmatprep.subr.bf16.mxu0 0
        %1632 = vmatpush2.bf16.msra.mxu0 0
        %1633 = vmatprep.subr.bf16.mxu0 0
        %1634 = vmatpush2.bf16.msra.mxu0 0
        %1635 = vmatprep.subr.bf16.mxu0 0
        %1636 = vmatpush2.bf16.msra.mxu0 0
        %1637 = vmatprep.mubr.bf16.mxu0 0
        %1638 = vmatmul.mubr.bf16.gmra.mxu0 %v1600
        %v1639 = vpop.f32.mrf.mxu0
        %v1640 = vadd.f32 0.0, %v1639
        %v1641 = vpop.f32.mrf.mxu0
        %v1642 = vpop.f32.mrf.mxu0
        %v1643 = vpop.f32.mrf.mxu0
        %1644 = vdwg.mxu0
        %v1645 = vmul.f32 %v1595, 0.125
        %v1646 = vpack.c.bf16 %v1645, %v1645
        %vm1647 = vcmask 60416
        %1648 = vst.msk [vmem:[%s477] sm:$0xf] %vm1647, %v1646
        %1650 = vrot.lane.b32.xlu0 %v968, 4
        %v1651 = vpop.permute.xlu0 %1650
        %1654 = vrot.lane.b32.xlu0 %v1078, 8
        %v1655 = vpop.permute.xlu0 %1654
        %1658 = vrot.lane.b32.xlu0 %v1192, 12
        %v1659 = vpop.permute.xlu0 %1658
        %1662 = vrot.lane.b32.xlu0 %v1302, 16
        %v1663 = vpop.permute.xlu0 %1662
        %1666 = vrot.lane.b32.xlu0 %v1416, 20
        %v1667 = vpop.permute.xlu0 %1666
        %1670 = vrot.lane.b32.xlu0 %v1526, 24
        %v1671 = vpop.permute.xlu0 %1670
        %1674 = vrot.lane.b32.xlu0 %v1640, 28
        %v1675 = vpop.permute.xlu0 %1674
        %v1677 = vsel %vm743, %v848, %v1651
        %v1678 = vsel %vm791, %v1677, %v1655
        %vm1679 = vcmask 97280
        %v1680 = vsel %vm1679, %v1678, %v1659
        %vm1681 = vcmask 130048
        %v1682 = vsel %vm1681, %v1680, %v1663
        %vm1683 = vcmask 162816
        %v1684 = vsel %vm1683, %v1682, %v1667
        %vm1685 = vcmask 195584
        %v1686 = vsel %vm1685, %v1684, %v1671
        %vm1687 = vcmask 228352
        %v1688 = vsel %vm1687, %v1686, %v1675
        %v1689 = vpack.c.bf16 %v1688, %v1688
        %v1690 = vld [vmem:[#allocation6] sm:$0xf]
        %v1691 = vld [vmem:[#allocation6 + $0x4] sm:$0xf]
        %v1692 = vld [vmem:[#allocation6 + $0x8] sm:$0xf]
        %v1693 = vld [vmem:[#allocation6 + $0xc] sm:$0xf]
        %v1694 = vld [vmem:[#allocation15] sm:$0x1]
        %v1696 = vlaneseq
        %v1697 = vshrl.u32 %v1696, 7
        %v1698 = vsub.s32 0, %v1697
        %v1699 = vrot.slane %v1694, %v1698
        %v1705 = vunpack.c.l.b16 %v1690
        %v1706 = vunpack.c.l.b16 %v1691
        %v1707 = vunpack.c.l.b16 %v1692
        %v1708 = vunpack.c.l.b16 %v1693
        %v1709 = vpack.c.b16 %v1706, %v1705
        %v1710 = vpack.c.b16 %v1708, %v1707
        %vm1713 = vcmask 261120
        %v1715 = vsel %vm1713, %v1689, 0
        %1717 = vmatprep.subr.bf16.mxu0 0
        %1718 = vmatpush1.bf16.msra.mxu0 0
        %1719 = vmatprep.subr.bf16.mxu0 0
        %1720 = vmatpush1.bf16.msra.mxu0 0
        %1721 = vmatprep.subr.bf16.mxu0 0
        %1722 = vmatpush1.bf16.msra.mxu0 0
        %1723 = vmatprep.subr.bf16.mxu0 0
        %1724 = vmatpush1.bf16.msra.mxu0 0
        %1725 = vmatprep.subr.bf16.mxu0 0
        %1726 = vmatpush1.bf16.msra.mxu0 0
        %1727 = vmatprep.subr.bf16.mxu0 0
        %1728 = vmatpush1.bf16.msra.mxu0 0
        %1729 = vmatprep.subr.bf16.mxu0 0
        %1730 = vmatpush1.bf16.msra.mxu0 %v1710
        %1731 = vmatprep.subr.bf16.mxu0 0
        %1732 = vmatpush1.bf16.msra.mxu0 %v1709
        %1733 = vmatprep.subr.bf16.mxu0 0
        %1734 = vmatpush2.bf16.msra.mxu0 0
        %1735 = vmatprep.subr.bf16.mxu0 0
        %1736 = vmatpush2.bf16.msra.mxu0 0
        %1737 = vmatprep.subr.bf16.mxu0 0
        %1738 = vmatpush2.bf16.msra.mxu0 0
        %1739 = vmatprep.subr.bf16.mxu0 0
        %1740 = vmatpush2.bf16.msra.mxu0 0
        %1741 = vmatprep.subr.bf16.mxu0 0
        %1742 = vmatpush2.bf16.msra.mxu0 0
        %1743 = vmatprep.subr.bf16.mxu0 0
        %1744 = vmatpush2.bf16.msra.mxu0 0
        %1745 = vmatprep.subr.bf16.mxu0 0
        %1746 = vmatpush2.bf16.msra.mxu0 0
        %1747 = vmatprep.subr.bf16.mxu0 0
        %1748 = vmatpush2.bf16.msra.mxu0 0
        %1749 = vmatprep.mubr.bf16.mxu0 0
        %1750 = vmatmul.mubr.bf16.gmra.mxu0 %v1715
        %v1751 = vpop.f32.mrf.mxu0
        %v1752 = vadd.f32 %v1699, %v1751
        %v1753 = vpop.f32.mrf.mxu0
        %v1754 = vpop.f32.mrf.mxu0
        %v1755 = vpop.f32.mrf.mxu0
        %1756 = vdwg.mxu0
        %v1757 = vld [vmem:[%s484] sm:$0xff]
        %v1758 = vadd.f32 %v1752, %v1757
        %v1759 = vsel %vm1713, %v1758, 0.0
        %1760 = vadd.xlane.f32.xlu0 %v1759
        %v1761 = vpop.xlane.xlu0 %1760
        %v1762 = vrcp.pop 32.0
        %v1763 = vmul.f32 %v1761, %v1762
        %v1764 = vsub.f32 %v1758, %v1763
        %v1765 = vmul.f32 %v1764, %v1764
        %v1766 = vsel %vm1713, %v1765, 0.0
        %1767 = vadd.xlane.f32.xlu0 %v1766
        %v1768 = vpop.xlane.xlu0 %1767
        %v1769 = vmul.f32 %v1768, %v1762
        %v1770 = vadd.f32 %v1769, 1e-05
        %v1771 = vrsqrt.pop %v1770
        %v1772 = vmul.f32 %v1764, %v1771
        %v1773 = vld [vmem:[#allocation16] sm:$0x1]
        %v1775 = vlaneseq
        %v1776 = vshrl.u32 %v1775, 7
        %v1777 = vsub.s32 0, %v1776
        %v1778 = vrot.slane %v1773, %v1777
        %v1780 = vmul.f32 %v1772, %v1778
        %v1781 = vld [vmem:[#allocation18] sm:$0x1]
        %v1783 = vlaneseq
        %v1784 = vshrl.u32 %v1783, 7
        %v1785 = vsub.s32 0, %v1784
        %v1786 = vrot.slane %v1781, %v1785
        %v1788 = vadd.f32 %v1780, %v1786
        %v1789 = vpack.c.bf16 %v1788, %v1788
        %v1790 = vld [vmem:[#allocation7] sm:$0xf]
        %v1791 = vld [vmem:[#allocation7 + $0x4] sm:$0xf]
        %v1792 = vld [vmem:[#allocation7 + $0x8] sm:$0xf]
        %v1793 = vld [vmem:[#allocation7 + $0xc] sm:$0xf]
        %v1794 = vld [vmem:[%s9] sm:$0x1]
        %v1796 = vlaneseq
        %v1797 = vshrl.u32 %v1796, 7
        %v1798 = vsub.s32 0, %v1797
        %v1799 = vrot.slane %v1794, %v1798
        %v1805 = vunpack.c.l.b16 %v1790
        %v1806 = vunpack.c.l.b16 %v1791
        %v1807 = vunpack.c.l.b16 %v1792
        %v1808 = vunpack.c.l.b16 %v1793
        %v1809 = vpack.c.b16 %v1806, %v1805
        %v1810 = vpack.c.b16 %v1808, %v1807
        %v1814 = vsel %vm1713, %v1789, 0
        %1816 = vmatprep.subr.bf16.mxu0 0
        %1817 = vmatpush1.bf16.msra.mxu0 0
        %1818 = vmatprep.subr.bf16.mxu0 0
        %1819 = vmatpush1.bf16.msra.mxu0 0
        %1820 = vmatprep.subr.bf16.mxu0 0
        %1821 = vmatpush1.bf16.msra.mxu0 0
        %1822 = vmatprep.subr.bf16.mxu0 0
        %1823 = vmatpush1.bf16.msra.mxu0 0
        %1824 = vmatprep.subr.bf16.mxu0 0
        %1825 = vmatpush1.bf16.msra.mxu0 0
        %1826 = vmatprep.subr.bf16.mxu0 0
        %1827 = vmatpush1.bf16.msra.mxu0 0
        %1828 = vmatprep.subr.bf16.mxu0 0
        %1829 = vmatpush1.bf16.msra.mxu0 %v1810
        %1830 = vmatprep.subr.bf16.mxu0 0
        %1831 = vmatpush1.bf16.msra.mxu0 %v1809
        %1832 = vmatprep.subr.bf16.mxu0 0
        %1833 = vmatpush2.bf16.msra.mxu0 0
        %1834 = vmatprep.subr.bf16.mxu0 0
        %1835 = vmatpush2.bf16.msra.mxu0 0
        %1836 = vmatprep.subr.bf16.mxu0 0
        %1837 = vmatpush2.bf16.msra.mxu0 0
        %1838 = vmatprep.subr.bf16.mxu0 0
        %1839 = vmatpush2.bf16.msra.mxu0 0
        %1840 = vmatprep.subr.bf16.mxu0 0
        %1841 = vmatpush2.bf16.msra.mxu0 0
        %1842 = vmatprep.subr.bf16.mxu0 0
        %1843 = vmatpush2.bf16.msra.mxu0 0
        %1844 = vmatprep.subr.bf16.mxu0 0
        %1845 = vmatpush2.bf16.msra.mxu0 0
        %1846 = vmatprep.subr.bf16.mxu0 0
        %1847 = vmatpush2.bf16.msra.mxu0 0
        %1848 = vmatprep.mubr.bf16.mxu0 0
        %1849 = vmatmul.mubr.bf16.gmra.mxu0 %v1814
        %v1850 = vpop.f32.mrf.mxu0
        %v1851 = vadd.f32 %v1799, %v1850
        %v1852 = vpop.f32.mrf.mxu0
        %v1853 = vpop.f32.mrf.mxu0
        %v1854 = vpop.f32.mrf.mxu0
        %1855 = vdwg.mxu0
        %v1856 = vmax.f32 %v1851, 0.0
        %v1857 = vld [vmem:[%s10] sm:$0x1]
        %v1859 = vlaneseq
        %v1860 = vshrl.u32 %v1859, 7
        %v1861 = vsub.s32 0, %v1860
        %v1862 = vrot.slane %v1857, %v1861
        %v1864 = vmul.f32 %v1856, %v1862
        %v1865 = vsel %vm1681, %v1864, 0.0
        %1866 = vadd.xlane.f32.xlu0 %v1865
        %v1867 = vpop.xlane.xlu0 %1866
        %v1868 = vld [vmem:[#allocation9] sm:$0x1]
        %v1870 = vlaneseq
        %v1871 = vshrl.u32 %v1870, 7
        %v1872 = vsub.s32 0, %v1871
        %v1873 = vrot.slane %v1868, %v1872
        %v1875 = vadd.f32 %v1867, %v1873
        %v1876 = vxor.u32 %v1875, 2147483648
        %v1877 = vmul.f32 %v1876, 1.442695
        %v1878 = vpow.pop %v1877
        %v1879 = vadd.f32 %v1878, 1.0
        %v1880 = vrcp.pop %v1879
        %v1881 = vmul.f32 1.0, %v1880
        %1883 = vset.pattern.permute.xlu0 0
        %1884 = vperm.xlu0 %1883, %v1881
        %v1885 = vpop.permute.xlu0 %1884
        %v1887 = vmul.f32 %v1788, %v1885
        %1888 = vst.msk [vmem:[%s470] sm:$0xff] %vm1713, %v1887
        %s1889 = sand.u32 %s261, 1
        %s1890 = scalar_lea.sflag [#allocation12], %s1889
        %s1891 = sand.u32 %s261, 1
        %s1892 = smul.addr %s1891, 8
        %s1893 = scalar_lea.vmem [#allocation19], %s1892
        %s1894 = sand.u32 %s289, 1
        %s1895 = scalar_lea.sflag [#allocation21], %s1894
        %s1896 = sand.u32 %s289, 1
        %s1897 = smul.addr %s1896, 4
        %s1898 = scalar_lea.vmem [#allocation20], %s1897
        // Predicated region
        $region153: #{tpu_custom_call.1} parent=55 // pred_check
          %p1899 = pneg %p271
        $region154: #{tpu_custom_call.1} parent=55 // pred_check_branch
          %1901 = sbr.rel (%p1899) target = $region156
        $region155: #{tpu_custom_call.1} parent=55 // pred_region
          %s1903 = ssub.s32 128, 128
          %1904 = vsyncadd %s1890, %s1903
          %s1905 = sadd.s32 %s43, %s42
          %s1906 = smul.addr %s1905, 128
          %s1907 = scalar_lea.hbm %s12, %s1906
          %s1909 = sshll.u32 %s1893, 4
          %s1910 = int_to_ptr.vmem [resolvable:$true] %s1909
          %1912 = dma.vmem_to_hbm [thread:$0]  %s1910, 128, %s1907, %s1890
        $region156: #{tpu_custom_call.1} parent=55 // pred_fallthru
          _
        // Predicated region
        $region157: #{tpu_custom_call.1} parent=55 // pred_check
          %p1913 = pneg %p299
        $region158: #{tpu_custom_call.1} parent=55 // pred_check_branch
          %1915 = sbr.rel (%p1913) target = $region160
        $region159: #{tpu_custom_call.1} parent=55 // pred_region
          %s1917 = ssub.s32 64, 64
          %1918 = vsyncadd %s1895, %s1917
          %s1919 = sadd.s32 %s43, %s42
          %s1920 = smul.addr %s1919, 64
          %s1921 = scalar_lea.hbm %s13, %s1920
          %s1923 = sshll.u32 %s1898, 4
          %s1924 = int_to_ptr.vmem [resolvable:$true] %s1923
          %1926 = dma.vmem_to_hbm [thread:$0]  %s1924, 64, %s1921, %s1895
        $region160: #{tpu_custom_call.1} parent=55 // pred_fallthru
          _
      $region56: #{tpu_custom_call.1} parent=5 // pred_fallthru
        _
      %p1927 = scmp.le.s32.totalorder 2, %s33
      // Predicated region
      $region161: #{tpu_custom_call.1} parent=5 // pred_check
        %p1928 = pneg %p1927
      $region162: #{tpu_custom_call.1} parent=5 // pred_check_branch
        %1930 = sbr.rel (%p1928) target = $region164
      $region163: #{tpu_custom_call.1} parent=5 // pred_region
        %s1931 = ssub.s32 %s33, 2
        // Predicated region
        $region165: #{tpu_custom_call.1} parent=163 // pred_check
          %p1932 = pneg %p277
        $region166: #{tpu_custom_call.1} parent=163 // pred_check_branch
          %1934 = sbr.rel (%p1932) target = $region168
        $region167: #{tpu_custom_call.1} parent=163 // pred_region
          %s1935 = sand.u32 %s262, 1
          %s1936 = scalar_lea.sflag [#allocation12], %s1935
          %s1937 = sand.u32 %s262, 1
          %s1938 = smul.addr %s1937, 8
          %s1939 = scalar_lea.vmem [#allocation19], %s1938
          %1940 = dma.done %s1936, 128
        $region168: #{tpu_custom_call.1} parent=163 // pred_fallthru
          _
        // Predicated region
        $region169: #{tpu_custom_call.1} parent=163 // pred_check
          %p1941 = pneg %p305
        $region170: #{tpu_custom_call.1} parent=163 // pred_check_branch
          %1943 = sbr.rel (%p1941) target = $region172
        $region171: #{tpu_custom_call.1} parent=163 // pred_region
          %s1944 = sand.u32 %s290, 1
          %s1945 = scalar_lea.sflag [#allocation21], %s1944
          %s1946 = sand.u32 %s290, 1
          %s1947 = smul.addr %s1946, 4
          %s1948 = scalar_lea.vmem [#allocation20], %s1947
          %1949 = dma.done %s1945, 64
        $region172: #{tpu_custom_call.1} parent=163 // pred_fallthru
          _
      $region164: #{tpu_custom_call.1} parent=5 // pred_fallthru
        _
    $region6: #{tpu_custom_call.1} parent=1 // loop_footer
      %s37 = sadd.s32 1, %s33
    $region7: #{tpu_custom_call.1} parent=1 // loop_footer_branch
      %32 = sbr.rel target = $region3
    $region8: #{tpu_custom_call.1} parent=1 // loop_exit
      _
    %1950 = vsyncpa [#allocation11], 1
    %s1951 = scalar_lea.sflag [#allocation11], 1
    %1952 = vsyncpa %s1951, 1
    %1953 = vsyncpa [#allocation14], 1
    %1954 = vsyncpa [#allocation17], 1
    %1955 = vsyncpa [#allocation12], 1
    %s1956 = scalar_lea.sflag [#allocation12], 1
    %1957 = vsyncpa %s1956, 1
    %1958 = vsyncpa [#allocation21], 1
    %s1959 = scalar_lea.sflag [#allocation21], 1
    %1960 = vsyncpa %s1959, 1
  %1961 = vsyncmov [#allocation8]
  %s1962 = vpop.sfrf %1961
  %p1963 = scmp.eq.s32.totalorder %s1962, 0
  %p1964 = pneg %p1963
  %1966 = shalt.err (%p1964)
  %s1967 = scalar_lea.sflag [#allocation8], 1
  %1968 = vsyncmov %s1967
  %s1969 = vpop.sfrf %1968
  %p1970 = scmp.eq.s32.totalorder %s1969, 0
  %p1971 = pneg %p1970
  %1973 = shalt.err (%p1971)
  %s1974 = scalar_lea.sflag [#allocation8], 2
  %1975 = vsyncmov %s1974
  %s1976 = vpop.sfrf %1975
  %p1977 = scmp.eq.s32.totalorder %s1976, 0
  %p1978 = pneg %p1977
  %1980 = shalt.err (%p1978)

</llo_original>
